<compile_context>
chip_gen: v5e
topology: v5e:2x2
jax: 0.10.0
libtpu: 0.0.40
codegen_flags: <defaults>
</compile_context>

<pallas_src>
import functools

import jax
import jax.numpy as jnp
from jax.experimental import pallas as pl
from jax.experimental.pallas import tpu as pltpu

MXU_TILE = 256  # pad MXU-facing dims to 256 (v6e/v7x MXU width; harmless on v5e)


def _round_up(n, m):
    return ((n + m - 1) // m) * m


# ---------------------------------------------------------------------------
# Fused kernel.  Grid = (batch tiles ["parallel"], patch tiles ["arbitrary"]).
#   per step : sum the (TB, TP, K) patch tile over TP, then
#              (TB, K) @ (K, DP) patch-embed matmul into a (TB, DP) f32 acc.
#   finalize : acc @ (Wh/P, padded) + folded bias  ->  (TB, OP) features.
# ---------------------------------------------------------------------------
def fused_encoder_kernel(x_ref, we_ref, wh_ref, bh_ref, o_ref, acc_ref):
    p_step = pl.program_id(1)

    @pl.when(p_step == 0)
    def _init():
        acc_ref[...] = jnp.zeros_like(acc_ref)

    # Linearity of embed -> mean-pool: pool the raw patches before the matmul.
    # Sum in f32, feed the MXU bf16, accumulate in f32.
    xsum = jnp.sum(x_ref[...], axis=1, dtype=jnp.float32)              # (TB, K)
    acc_ref[...] += jnp.dot(xsum.astype(we_ref.dtype), we_ref[...],
                            preferred_element_type=jnp.float32)        # (TB, DP)

    @pl.when(p_step == pl.num_programs(1) - 1)
    def _finalize():
        # wh_ref already carries the 1/P mean scale; bh_ref carries
        # embed_b @ proj_w + proj_b.  Output is lane-dense (TB, OP).
        feats = jnp.dot(acc_ref[...].astype(wh_ref.dtype), wh_ref[...],
                        preferred_element_type=jnp.float32) + bh_ref[...]
        o_ref[...] = feats.astype(o_ref.dtype)


# ---------------------------------------------------------------------------
# Wrapper: ImageEncoder.forward  (B, C, H, W) images -> (B, OUT) features
# ---------------------------------------------------------------------------
def image_encoder_forward(x_nchw, params, *, patch=4, tile_p=8, tile_b=8,
                          single_buffer_weights=True):
    B, C, H, W = x_nchw.shape
    ph = pw = patch
    Hp, Wp = H // ph, W // pw
    P = Hp * Wp
    K = C * ph * pw

    we = params["embed_w"]   # (K, D)
    be = params["embed_b"]   # (D,)
    wh = params["proj_w"]    # (D, OUT)
    bh = params["proj_b"]    # (OUT,)
    D = we.shape[1]
    OUT = wh.shape[1]

    # ---- tiling ------------------------------------------------------------
    # Patch tile: multiple of 8 sublanes.  The kernel is HBM-bound on the
    # image read, so TP is sized for DMA / per-step-overhead amortization
    # (real ViT shapes would use 128-512 patches/tile, ~0.5-2 MiB per x tile).
    TP = max(8, _round_up(tile_p, 8))
    P_pad = _round_up(P, TP)
    # Batch tile: second-to-last dim of the output block must be a multiple
    # of 8 or the full batch.
    if B % tile_b == 0 and (tile_b % 8 == 0 or tile_b == B):
        TB = tile_b
    else:
        TB = B
    DP = _round_up(D, MXU_TILE)
    OP = _round_up(OUT, MXU_TILE)

    # ---- one-time layout pass: NCHW -> (B, P_pad, K) bf16 patches -----------
    # TODO(synk): this transpose+cast is a full HBM pre-pass over the images;
    # in a real pipeline store images NHWC / pre-patched (bf16) at load time
    # so the kernel's input DMA reads them directly.
    xp = x_nchw.reshape(B, C, Hp, ph, Wp, pw)
    xp = jnp.transpose(xp, (0, 2, 4, 1, 3, 5)).reshape(B, P, K)
    xp = xp.astype(jnp.bfloat16)
    if P_pad != P:
        xp = jnp.pad(xp, ((0, 0), (0, P_pad - P), (0, 0)))  # zero patches: exact

    # ---- fold mean + embed bias into the head; bf16 operands ---------------
    #   mean_p(x_p @ We + be) @ Wh + bh
    #     == ((sum_p x_p) @ We) @ (Wh / P) + (be @ Wh + bh)
    we_p = jnp.pad(we, ((0, 0), (0, DP - D))).astype(jnp.bfloat16)              # (K, DP)
    wh_fold = jnp.pad(wh / P, ((0, DP - D), (0, OP - OUT))).astype(jnp.bfloat16)  # (DP, OP)
    bh_fold = jnp.pad(be @ wh + bh, (0, OP - OUT)).reshape(1, OP).astype(jnp.float32)

    grid = (B // TB, P_pad // TP)

    # Weights have constant block indices -> fetch once, single buffer.
    wspec_kwargs = {"pipeline_mode": pl.Buffered(1)} if single_buffer_weights else {}
    in_specs = [
        pl.BlockSpec((TB, TP, K), lambda b, p: (b, p, 0)),            # patch tile
        pl.BlockSpec((K, DP), lambda b, p: (0, 0), **wspec_kwargs),   # embed weight
        pl.BlockSpec((DP, OP), lambda b, p: (0, 0), **wspec_kwargs),  # folded head weight
        pl.BlockSpec((1, OP), lambda b, p: (0, 0), **wspec_kwargs),   # folded head bias
    ]

    # VMEM budget from actual tile sizes (2x headroom), capped at 48 MiB so it
    # also fits a v7x TensorCore; floor at the 32 MiB default scoped limit.
    n_wbuf = 1 if single_buffer_weights else 2
    need = (2 * TB * TP * K * 2                                   # x tile, double-buffered bf16
            + n_wbuf * ((K * DP + DP * OP) * 2 + OP * 4)          # resident weights
            + 2 * TB * OP * 4                                     # output, double-buffered f32
            + TB * DP * 4)                                        # accumulator
    vmem_limit = int(max(32 * 1024 * 1024,
                         min(48 * 1024 * 1024, 2 * need + (4 << 20))))

    cost = pl.CostEstimate(
        flops=2 * B * (P_pad // TP) * K * DP + B * P_pad * K + 2 * B * DP * OP,
        transcendentals=0,
        bytes_accessed=(xp.size * 2 + we_p.size * 2 + wh_fold.size * 2
                        + bh_fold.size * 4 + B * OP * 4),
    )

    out_p = pl.pallas_call(
        fused_encoder_kernel,
        out_shape=jax.ShapeDtypeStruct((B, OP), jnp.float32),
        grid_spec=pltpu.PrefetchScalarGridSpec(
            num_scalar_prefetch=0,
            grid=grid,
            in_specs=in_specs,
            out_specs=pl.BlockSpec((TB, OP), lambda b, p: (b, 0)),
            scratch_shapes=[pltpu.VMEM((TB, DP), jnp.float32)],
        ),
        compiler_params=pltpu.CompilerParams(
            # batch axis is independent (megacore-shardable on v7x);
            # the patch axis carries the accumulator -> "arbitrary".
            dimension_semantics=("parallel", "arbitrary"),
            vmem_limit_bytes=vmem_limit,
        ),
        cost_estimate=cost,
    )(xp, we_p, wh_fold, bh_fold)

    return out_p[:, :OUT]


# ---------------------------------------------------------------------------
# Pure-JAX reference (all-f32)
# ---------------------------------------------------------------------------
def reference_forward(x_nchw, params, *, patch=4):
    B, C, H, W = x_nchw.shape
    ph = pw = patch
    Hp, Wp = H // ph, W // pw
    xp = x_nchw.reshape(B, C, Hp, ph, Wp, pw)
    xp = jnp.transpose(xp, (0, 2, 4, 1, 3, 5)).reshape(B, Hp * Wp, C * ph * pw)
    emb = xp @ params["embed_w"] + params["embed_b"]      # (B, P, D)
    pooled = emb.mean(axis=1)                             # (B, D)
    return pooled @ params["proj_w"] + params["proj_b"]   # (B, OUT)


if __name__ == "__main__":
    key = jax.random.PRNGKey(0)
    k_x, k_ew, k_eb, k_hw, k_hb = jax.random.split(key, 5)

    # Small shapes consistent with an image forward: B=2, C=4, 16x16 images.
    B, C, H, W = 2, 4, 16, 16
    patch = 4
    D = 32     # encoder hidden dim
    OUT = 8    # output feature dim
    K = C * patch * patch

    x = jax.random.normal(k_x, (B, C, H, W), dtype=jnp.float32)
    params = {
        "embed_w": 0.2 * jax.random.normal(k_ew, (K, D), dtype=jnp.float32),
        "embed_b": 0.1 * jax.random.normal(k_eb, (D,), dtype=jnp.float32),
        "proj_w": 0.2 * jax.random.normal(k_hw, (D, OUT), dtype=jnp.float32),
        "proj_b": 0.1 * jax.random.normal(k_hb, (OUT,), dtype=jnp.float32),
    }

    def run(single_buffer_weights):
        fwd = jax.jit(functools.partial(
            image_encoder_forward, patch=patch, tile_p=8, tile_b=8,
            single_buffer_weights=single_buffer_weights))
        return jax.block_until_ready(fwd(x, params))

    try:
        feats = run(True)
    except Exception:
        # pl.Buffered(1) single-buffering unavailable on this jax build;
        # fall back to default double-buffered weight blocks.
        feats = run(False)

    ref = reference_forward(x, params, patch=patch)
    assert feats.shape == (B, OUT)
    # bf16 operands with f32 accumulation vs. the all-f32 reference.
    assert jnp.allclose(feats, ref, atol=3e-2, rtol=3e-2), "mismatch vs reference"

    # TODO(synk): open_clip pretrained weights/preprocess and ImageEncoder.save/
    # load (torch serialization) have no Pallas equivalent; not translated.
    print("KERNEL_OK")
</pallas_src>

<mosaic_0001>
module attributes {stable_mosaic.version = 11 : i64} {
  func.func @fused_encoder_kernel(%arg0: i32, %arg1: i32, %arg2: memref<2x8x64xbf16, #tpu.memory_space<vmem>>, %arg3: memref<64x256xbf16, #tpu.memory_space<vmem>>, %arg4: memref<256x256xbf16, #tpu.memory_space<vmem>>, %arg5: memref<1x256xf32, #tpu.memory_space<vmem>>, %arg6: memref<2x256xf32, #tpu.memory_space<vmem>>, %arg7: memref<2x256xf32, #tpu.memory_space<vmem>>) attributes {dimension_semantics = [#tpu.dimension_semantics<parallel>, #tpu.dimension_semantics<arbitrary>], iteration_bounds = array<i64: 1, 2>, scalar_prefetch = 0 : i64, scratch_operands = 1 : i64, tpu.core_type = #tpu.core_type<tc>, window_params = [{transform_indices = @transform_0, window_bounds = array<i64: 2, 8, 64>}, {pipeline_mode = #tpu.pipeline_mode<synchronous>, transform_indices = @transform_1, window_bounds = array<i64: 64, 256>}, {pipeline_mode = #tpu.pipeline_mode<synchronous>, transform_indices = @transform_2, window_bounds = array<i64: 256, 256>}, {pipeline_mode = #tpu.pipeline_mode<synchronous>, transform_indices = @transform_3, window_bounds = array<i64: 1, 256>}, {transform_indices = @transform_4, window_bounds = array<i64: 2, 256>}]} {
    %c0_i32 = arith.constant 0 : i32
    %0 = arith.cmpi eq, %arg1, %c0_i32 : i32
    %1 = arith.extui %0 : i1 to i32
    %c0_i32_0 = arith.constant 0 : i32
    %2 = arith.cmpi ne, %1, %c0_i32_0 : i32
    scf.if %2 {
      %cst_11 = arith.constant 0.000000e+00 : f32
      %15 = vector.broadcast %cst_11 : f32 to vector<2x256xf32>
      %c0_12 = arith.constant 0 : index
      %c0_13 = arith.constant 0 : index
      %16 = vector.load %arg7[%c0_12, %c0_13] : memref<2x256xf32, #tpu.memory_space<vmem>>, vector<2x256xf32>
      tpu.vector_store %arg7[%c0_12, %c0_13], %15 {strides = array<i32>} : memref<2x256xf32, #tpu.memory_space<vmem>>, vector<2x256xf32>,
    } else {
    }
    %c0 = arith.constant 0 : index
    %c0_1 = arith.constant 0 : index
    %c0_2 = arith.constant 0 : index
    %3 = vector.load %arg2[%c0, %c0_1, %c0_2] : memref<2x8x64xbf16, #tpu.memory_space<vmem>>, vector<2x8x64xbf16>
    %4 = arith.extf %3 : vector<2x8x64xbf16> to vector<2x8x64xf32>
    %cst = arith.constant dense<0.000000e+00> : vector<2x64xf32>
    %5 = vector.multi_reduction <add>, %4, %cst [1] : vector<2x8x64xf32> to vector<2x64xf32>
    %c0_3 = arith.constant 0 : index
    %c0_4 = arith.constant 0 : index
    %6 = vector.load %arg7[%c0_3, %c0_4] : memref<2x256xf32, #tpu.memory_space<vmem>>, vector<2x256xf32>
    %7 = arith.truncf %5 : vector<2x64xf32> to vector<2x64xbf16>
    %c0_5 = arith.constant 0 : index
    %c0_6 = arith.constant 0 : index
    %8 = vector.load %arg3[%c0_5, %c0_6] : memref<64x256xbf16, #tpu.memory_space<vmem>>, vector<64x256xbf16>
    %cst_7 = arith.constant dense<0.000000e+00> : vector<2x256xf32>
    %9 = tpu.matmul %7, %8, %cst_7 {dimension_numbers = #tpu.dot_dimension_numbers<[1], [0], [0], [1], [0, 0, 1, 1], [], []>} : vector<2x64xbf16>, vector<64x256xbf16>, vector<2x256xf32> -> vector<2x256xf32>
    %10 = arith.addf %6, %9 : vector<2x256xf32>
    %c0_8 = arith.constant 0 : index
    %c0_9 = arith.constant 0 : index
    %11 = vector.load %arg7[%c0_8, %c0_9] : memref<2x256xf32, #tpu.memory_space<vmem>>, vector<2x256xf32>
    tpu.vector_store %arg7[%c0_8, %c0_9], %10 {strides = array<i32>} : memref<2x256xf32, #tpu.memory_space<vmem>>, vector<2x256xf32>,
    %c1_i32 = arith.constant 1 : i32
    %12 = arith.cmpi eq, %arg1, %c1_i32 : i32
    %13 = arith.extui %12 : i1 to i32
    %c0_i32_10 = arith.constant 0 : i32
    %14 = arith.cmpi ne, %13, %c0_i32_10 : i32
    scf.if %14 {
      %c0_11 = arith.constant 0 : index
      %c0_12 = arith.constant 0 : index
      %15 = vector.load %arg7[%c0_11, %c0_12] : memref<2x256xf32, #tpu.memory_space<vmem>>, vector<2x256xf32>
      %16 = arith.truncf %15 : vector<2x256xf32> to vector<2x256xbf16>
      %c0_13 = arith.constant 0 : index
      %c0_14 = arith.constant 0 : index
      %17 = vector.load %arg4[%c0_13, %c0_14] : memref<256x256xbf16, #tpu.memory_space<vmem>>, vector<256x256xbf16>
      %cst_15 = arith.constant dense<0.000000e+00> : vector<2x256xf32>
      %18 = tpu.matmul %16, %17, %cst_15 {dimension_numbers = #tpu.dot_dimension_numbers<[1], [0], [0], [1], [0, 0, 1, 1], [], []>} : vector<2x256xbf16>, vector<256x256xbf16>, vector<2x256xf32> -> vector<2x256xf32>
      %c0_16 = arith.constant 0 : index
      %c0_17 = arith.constant 0 : index
      %19 = vector.load %arg5[%c0_16, %c0_17] : memref<1x256xf32, #tpu.memory_space<vmem>>, vector<1x256xf32>
      %20 = vector.broadcast %19 : vector<1x256xf32> to vector<2x256xf32>
      %21 = arith.addf %18, %20 : vector<2x256xf32>
      %c0_18 = arith.constant 0 : index
      %c0_19 = arith.constant 0 : index
      %22 = vector.load %arg6[%c0_18, %c0_19] : memref<2x256xf32, #tpu.memory_space<vmem>>, vector<2x256xf32>
      tpu.vector_store %arg6[%c0_18, %c0_19], %21 {strides = array<i32>} : memref<2x256xf32, #tpu.memory_space<vmem>>, vector<2x256xf32>,
    } else {
    }
    return
  }
  func.func @transform_0(%arg0: i32, %arg1: i32) -> (i32, i32, i32) {
    %c0_i32 = arith.constant 0 : i32
    %c0_i32_0 = arith.constant 0 : i32
    return %arg0, %arg1, %c0_i32 : i32, i32, i32
  }
  func.func @transform_1(%arg0: i32, %arg1: i32) -> (i32, i32) {
    %c0_i32 = arith.constant 0 : i32
    %c0_i32_0 = arith.constant 0 : i32
    %c0_i32_1 = arith.constant 0 : i32
    return %c0_i32, %c0_i32_0 : i32, i32
  }
  func.func @transform_2(%arg0: i32, %arg1: i32) -> (i32, i32) {
    %c0_i32 = arith.constant 0 : i32
    %c0_i32_0 = arith.constant 0 : i32
    %c0_i32_1 = arith.constant 0 : i32
    return %c0_i32, %c0_i32_0 : i32, i32
  }
  func.func @transform_3(%arg0: i32, %arg1: i32) -> (i32, i32) {
    %c0_i32 = arith.constant 0 : i32
    %c0_i32_0 = arith.constant 0 : i32
    %c0_i32_1 = arith.constant 0 : i32
    return %c0_i32, %c0_i32_0 : i32, i32
  }
  func.func @transform_4(%arg0: i32, %arg1: i32) -> (i32, i32) {
    %c0_i32 = arith.constant 0 : i32
    %c0_i32_0 = arith.constant 0 : i32
    return %arg0, %c0_i32 : i32, i32
  }
}

module attributes {stable_mosaic.version = 11 : i64} {
  func.func @fused_encoder_kernel(%arg0: i32, %arg1: i32, %arg2: memref<2x8x64xbf16, #tpu.memory_space<vmem>>, %arg3: memref<64x256xbf16, #tpu.memory_space<vmem>>, %arg4: memref<256x256xbf16, #tpu.memory_space<vmem>>, %arg5: memref<1x256xf32, #tpu.memory_space<vmem>>, %arg6: memref<2x256xf32, #tpu.memory_space<vmem>>, %arg7: memref<2x256xf32, #tpu.memory_space<vmem>>) attributes {dimension_semantics = [#tpu.dimension_semantics<parallel>, #tpu.dimension_semantics<arbitrary>], iteration_bounds = array<i64: 1, 2>, scalar_prefetch = 0 : i64, scratch_operands = 1 : i64, tpu.core_type = #tpu.core_type<tc>, window_params = [{transform_indices = @transform_0, window_bounds = array<i64: 2, 8, 64>}, {pipeline_mode = #tpu.pipeline_mode<synchronous>, transform_indices = @transform_1, window_bounds = array<i64: 64, 256>}, {pipeline_mode = #tpu.pipeline_mode<synchronous>, transform_indices = @transform_2, window_bounds = array<i64: 256, 256>}, {pipeline_mode = #tpu.pipeline_mode<synchronous>, transform_indices = @transform_3, window_bounds = array<i64: 1, 256>}, {transform_indices = @transform_4, window_bounds = array<i64: 2, 256>}]} {
    %c0_i32 = arith.constant 0 : i32
    %0 = arith.cmpi eq, %arg1, %c0_i32 : i32
    %1 = arith.extui %0 : i1 to i32
    %c0_i32_0 = arith.constant 0 : i32
    %2 = arith.cmpi ne, %1, %c0_i32_0 : i32
    scf.if %2 {
      %cst_11 = arith.constant 0.000000e+00 : f32
      %15 = vector.broadcast %cst_11 : f32 to vector<2x256xf32>
      %c0_12 = arith.constant 0 : index
      %c0_13 = arith.constant 0 : index
      %16 = vector.load %arg7[%c0_12, %c0_13] : memref<2x256xf32, #tpu.memory_space<vmem>>, vector<2x256xf32>
      tpu.vector_store %arg7[%c0_12, %c0_13], %15 {strides = array<i32>} : memref<2x256xf32, #tpu.memory_space<vmem>>, vector<2x256xf32>,
    } else {
    }
    %c0 = arith.constant 0 : index
    %c0_1 = arith.constant 0 : index
    %c0_2 = arith.constant 0 : index
    %3 = vector.load %arg2[%c0, %c0_1, %c0_2] : memref<2x8x64xbf16, #tpu.memory_space<vmem>>, vector<2x8x64xbf16>
    %4 = arith.extf %3 : vector<2x8x64xbf16> to vector<2x8x64xf32>
    %cst = arith.constant dense<0.000000e+00> : vector<2x64xf32>
    %5 = vector.multi_reduction <add>, %4, %cst [1] : vector<2x8x64xf32> to vector<2x64xf32>
    %c0_3 = arith.constant 0 : index
    %c0_4 = arith.constant 0 : index
    %6 = vector.load %arg7[%c0_3, %c0_4] : memref<2x256xf32, #tpu.memory_space<vmem>>, vector<2x256xf32>
    %7 = arith.truncf %5 : vector<2x64xf32> to vector<2x64xbf16>
    %c0_5 = arith.constant 0 : index
    %c0_6 = arith.constant 0 : index
    %8 = vector.load %arg3[%c0_5, %c0_6] : memref<64x256xbf16, #tpu.memory_space<vmem>>, vector<64x256xbf16>
    %cst_7 = arith.constant dense<0.000000e+00> : vector<2x256xf32>
    %9 = tpu.matmul %7, %8, %cst_7 {dimension_numbers = #tpu.dot_dimension_numbers<[1], [0], [0], [1], [0, 0, 1, 1], [], []>} : vector<2x64xbf16>, vector<64x256xbf16>, vector<2x256xf32> -> vector<2x256xf32>
    %10 = arith.addf %6, %9 : vector<2x256xf32>
    %c0_8 = arith.constant 0 : index
    %c0_9 = arith.constant 0 : index
    %11 = vector.load %arg7[%c0_8, %c0_9] : memref<2x256xf32, #tpu.memory_space<vmem>>, vector<2x256xf32>
    tpu.vector_store %arg7[%c0_8, %c0_9], %10 {strides = array<i32>} : memref<2x256xf32, #tpu.memory_space<vmem>>, vector<2x256xf32>,
    %c1_i32 = arith.constant 1 : i32
    %12 = arith.cmpi eq, %arg1, %c1_i32 : i32
    %13 = arith.extui %12 : i1 to i32
    %c0_i32_10 = arith.constant 0 : i32
    %14 = arith.cmpi ne, %13, %c0_i32_10 : i32
    scf.if %14 {
      %c0_11 = arith.constant 0 : index
      %c0_12 = arith.constant 0 : index
      %15 = vector.load %arg7[%c0_11, %c0_12] : memref<2x256xf32, #tpu.memory_space<vmem>>, vector<2x256xf32>
      %16 = arith.truncf %15 : vector<2x256xf32> to vector<2x256xbf16>
      %c0_13 = arith.constant 0 : index
      %c0_14 = arith.constant 0 : index
      %17 = vector.load %arg4[%c0_13, %c0_14] : memref<256x256xbf16, #tpu.memory_space<vmem>>, vector<256x256xbf16>
      %cst_15 = arith.constant dense<0.000000e+00> : vector<2x256xf32>
      %18 = tpu.matmul %16, %17, %cst_15 {dimension_numbers = #tpu.dot_dimension_numbers<[1], [0], [0], [1], [0, 0, 1, 1], [], []>} : vector<2x256xbf16>, vector<256x256xbf16>, vector<2x256xf32> -> vector<2x256xf32>
      %c0_16 = arith.constant 0 : index
      %c0_17 = arith.constant 0 : index
      %19 = vector.load %arg5[%c0_16, %c0_17] : memref<1x256xf32, #tpu.memory_space<vmem>>, vector<1x256xf32>
      %20 = vector.broadcast %19 : vector<1x256xf32> to vector<2x256xf32>
      %21 = arith.addf %18, %20 : vector<2x256xf32>
      %c0_18 = arith.constant 0 : index
      %c0_19 = arith.constant 0 : index
      %22 = vector.load %arg6[%c0_18, %c0_19] : memref<2x256xf32, #tpu.memory_space<vmem>>, vector<2x256xf32>
      tpu.vector_store %arg6[%c0_18, %c0_19], %21 {strides = array<i32>} : memref<2x256xf32, #tpu.memory_space<vmem>>, vector<2x256xf32>,
    } else {
    }
    return
  }
  func.func @transform_0(%arg0: i32, %arg1: i32) -> (i32, i32, i32) {
    %c0_i32 = arith.constant 0 : i32
    %c0_i32_0 = arith.constant 0 : i32
    return %arg0, %arg1, %c0_i32 : i32, i32, i32
  }
  func.func @transform_1(%arg0: i32, %arg1: i32) -> (i32, i32) {
    %c0_i32 = arith.constant 0 : i32
    %c0_i32_0 = arith.constant 0 : i32
    %c0_i32_1 = arith.constant 0 : i32
    return %c0_i32, %c0_i32_0 : i32, i32
  }
  func.func @transform_2(%arg0: i32, %arg1: i32) -> (i32, i32) {
    %c0_i32 = arith.constant 0 : i32
    %c0_i32_0 = arith.constant 0 : i32
    %c0_i32_1 = arith.constant 0 : i32
    return %c0_i32, %c0_i32_0 : i32, i32
  }
  func.func @transform_3(%arg0: i32, %arg1: i32) -> (i32, i32) {
    %c0_i32 = arith.constant 0 : i32
    %c0_i32_0 = arith.constant 0 : i32
    %c0_i32_1 = arith.constant 0 : i32
    return %c0_i32, %c0_i32_0 : i32, i32
  }
  func.func @transform_4(%arg0: i32, %arg1: i32) -> (i32, i32) {
    %c0_i32 = arith.constant 0 : i32
    %c0_i32_0 = arith.constant 0 : i32
    return %arg0, %c0_i32 : i32, i32
  }
}

</mosaic_0001>

<llo_original>
// kernel: image_encoder_forward.1
$region0: #{image_encoder_forward.1}
  #allocation0 [shape = 'u32[]', space=smem, size = 0x4, offset = 0x4, fixed_abs, tag = 'smem constant byte address 0x4 - core index']
  #allocation1 [shape = 'u32[72,128]{1,0:T(1,128)}', space=vmem, size = 0x9000, scoped, tag = 'internal scratch']
  #allocation2 [shape = 'f32[2,256]{1,0:T(2,128)}', space=vmem, size = 0x800, scoped, tag = 'scratch operand']
  %s0 = inlined_call_operand.vmem [shape: bf16[2,16,64], index: 0, kind: input, shape index: {}]
  %s1 = inlined_call_operand.vmem [shape: bf16[64,256], index: 1, kind: input, shape index: {}]
  %s2 = inlined_call_operand.vmem [shape: bf16[256,256], index: 2, kind: input, shape index: {}]
  %s3 = inlined_call_operand.vmem [shape: f32[1,256], index: 3, kind: input, shape index: {}]
  %s4 = inlined_call_operand.vmem [shape: f32[2,256], index: 4, kind: output, shape index: {}]
  %s5 = sld [smem:[#allocation0]]
  $region98: #{image_encoder_forward.1} parent=0
    _
  %s7 = ssub.s32 1, %s5
  %s8 = scalar_select 0, %s7, %s5
  $region1: #{image_encoder_forward.1} parent=0
    #allocation3 [shape = 'u8[8192]{0}', space=vmem, size = 0x2000, scoped, tag = 'input window, operand 0']
    loop: start=0, step=1, limit=4
    $region2: #{image_encoder_forward.1} parent=1 // loop_pre_header
      _
    $region3: #{image_encoder_forward.1} parent=1 // loop_header
      %s10 = sphi 0, %s14
      %p11 = scmp.ge.s32.totalorder %s10, 4
      %s17 = sphi 0, %s29
      %s18 = sphi 0, %s25
      %s19 = sphi 0, %s17
      %s20 = sphi 0, %s18
      %s21 = sphi 0, %s19
      %s22 = sphi 0, %s20
      %s34 = sphi 0, %s36
      %s37 = sphi 0, %s34
      %s38 = sphi 0, %s37
      %s54 = sphi 0, %s38
      %s58 = sphi 0, %s58
      %s60 = sphi 0, %s58
      %s61 = sphi 0, %s60
      %s75 = sphi 0, %s61
      %s79 = sphi 0, %s79
      %s81 = sphi 0, %s79
      %s82 = sphi 0, %s81
      %s96 = sphi 0, %s82
      %s100 = sphi 0, %s100
      %s102 = sphi 0, %s100
      %s103 = sphi 0, %s102
      %s117 = sphi 0, %s103
      %s123 = sphi 0, %s125
      %s126 = sphi 0, %s123
      %s127 = sphi 0, %s126
      %s143 = sphi 0, %s127
    $region4: #{image_encoder_forward.1} parent=1 // loop_header_branch
      %13 = sbr.rel (%p11) target = $region8
    $region5: #{image_encoder_forward.1} parent=1 // loop_body
      %s15 = ssub.s32 %s10, 1
      %s16 = ssub.s32 %s10, 2
      %s23 = sadd.s32 1, %s18
      %p24 = scmp.ge.s32.totalorder %s23, 2
      %s25 = scalar_select %p24, 0, %s23
      %s26 = sadd.s32 1, %s17
      %s27 = scalar_select %p24, %s26, %s17
      %p28 = scmp.ge.s32.totalorder %s27, 1
      %s29 = scalar_select %p28, 0, %s27
      %s30 = ssub.s32 %s17, %s29
      %s31 = ssub.s32 %s18, %s25
      %s32 = sor.u32 %s30, %s31
      %p33 = scmp.eq.s32.totalorder %s32, 0
      %s35 = sadd.s32 %s34, 1
      %s36 = scalar_select %p33, %s34, %s35
      %p39 = pneg %p33
      %p40 = scmp.eq.s32.totalorder %s10, 1
      %p41 = por %p39, %p40
      %p42 = scmp.ne.s32.totalorder %s34, %s37
      %p43 = scmp.eq.s32.totalorder %s10, 0
      %p44 = por %p42, %p43
      %p45 = scmp.ne.s32.totalorder %s34, %s37
      %p46 = scmp.eq.s32.totalorder %s15, 1
      %p47 = por %p45, %p46
      %p48 = scmp.ne.s32.totalorder %s37, %s38
      %p49 = scmp.eq.s32.totalorder %s15, 0
      %p50 = por %p48, %p49
      %p51 = scmp.ne.s32.totalorder %s37, %s38
      %p52 = scmp.eq.s32.totalorder %s16, 1
      %p53 = por %p51, %p52
      %p55 = scmp.ne.s32.totalorder %s38, %s54
      %p56 = scmp.eq.s32.totalorder %s16, 0
      %p57 = por %p55, %p56
      %s59 = sadd.s32 %s58, 1
      %p62 = scmp.eq.s32.totalorder %s10, 1
      %p63 = scmp.ne.s32.totalorder %s58, %s60
      %p64 = scmp.eq.s32.totalorder %s10, 0
      %p65 = por %p63, %p64
      %p66 = scmp.ne.s32.totalorder %s58, %s60
      %p67 = scmp.eq.s32.totalorder %s15, 1
      %p68 = por %p66, %p67
      %p69 = scmp.ne.s32.totalorder %s60, %s61
      %p70 = scmp.eq.s32.totalorder %s15, 0
      %p71 = por %p69, %p70
      %p72 = scmp.ne.s32.totalorder %s60, %s61
      %p73 = scmp.eq.s32.totalorder %s16, 1
      %p74 = por %p72, %p73
      %p76 = scmp.ne.s32.totalorder %s61, %s75
      %p77 = scmp.eq.s32.totalorder %s16, 0
      %p78 = por %p76, %p77
      %s80 = sadd.s32 %s79, 1
      %p83 = scmp.eq.s32.totalorder %s10, 1
      %p84 = scmp.ne.s32.totalorder %s79, %s81
      %p85 = scmp.eq.s32.totalorder %s10, 0
      %p86 = por %p84, %p85
      %p87 = scmp.ne.s32.totalorder %s79, %s81
      %p88 = scmp.eq.s32.totalorder %s15, 1
      %p89 = por %p87, %p88
      %p90 = scmp.ne.s32.totalorder %s81, %s82
      %p91 = scmp.eq.s32.totalorder %s15, 0
      %p92 = por %p90, %p91
      %p93 = scmp.ne.s32.totalorder %s81, %s82
      %p94 = scmp.eq.s32.totalorder %s16, 1
      %p95 = por %p93, %p94
      %p97 = scmp.ne.s32.totalorder %s82, %s96
      %p98 = scmp.eq.s32.totalorder %s16, 0
      %p99 = por %p97, %p98
      %s101 = sadd.s32 %s100, 1
      %p104 = scmp.eq.s32.totalorder %s10, 1
      %p105 = scmp.ne.s32.totalorder %s100, %s102
      %p106 = scmp.eq.s32.totalorder %s10, 0
      %p107 = por %p105, %p106
      %p108 = scmp.ne.s32.totalorder %s100, %s102
      %p109 = scmp.eq.s32.totalorder %s15, 1
      %p110 = por %p108, %p109
      %p111 = scmp.ne.s32.totalorder %s102, %s103
      %p112 = scmp.eq.s32.totalorder %s15, 0
      %p113 = por %p111, %p112
      %p114 = scmp.ne.s32.totalorder %s102, %s103
      %p115 = scmp.eq.s32.totalorder %s16, 1
      %p116 = por %p114, %p115
      %p118 = scmp.ne.s32.totalorder %s103, %s117
      %p119 = scmp.eq.s32.totalorder %s16, 0
      %p120 = por %p118, %p119
      %s121 = ssub.s32 %s17, %s29
      %p122 = scmp.eq.s32.totalorder %s121, 0
      %s124 = sadd.s32 %s123, 1
      %s125 = scalar_select %p122, %s123, %s124
      %p128 = pneg %p122
      %p129 = scmp.eq.s32.totalorder %s10, 1
      %p130 = por %p128, %p129
      %p131 = scmp.ne.s32.totalorder %s123, %s126
      %p132 = scmp.eq.s32.totalorder %s10, 0
      %p133 = por %p131, %p132
      %p134 = scmp.ne.s32.totalorder %s123, %s126
      %p135 = scmp.eq.s32.totalorder %s15, 1
      %p136 = por %p134, %p135
      %p137 = scmp.ne.s32.totalorder %s126, %s127
      %p138 = scmp.eq.s32.totalorder %s15, 0
      %p139 = por %p137, %p138
      %p140 = scmp.ne.s32.totalorder %s126, %s127
      %p141 = scmp.eq.s32.totalorder %s16, 1
      %p142 = por %p140, %p141
      %p144 = scmp.ne.s32.totalorder %s127, %s143
      %p145 = scmp.eq.s32.totalorder %s16, 0
      %p146 = por %p144, %p145
      %p147 = scmp.le.s32.totalorder 1, %s10
      %p148 = scmp.lt.s32.totalorder %s10, 3
      %p149 = pnand %p147, %p148
      %p150 = pneg %p149
      // Predicated region
      $region9: #{image_encoder_forward.1} parent=5 // pred_check
        _
      $region10: #{image_encoder_forward.1} parent=5 // pred_check_branch
        %152 = sbr.rel (%p149) target = $region12
      $region11: #{image_encoder_forward.1} parent=5 // pred_region
        %s153 = ssub.s32 %s10, 1
        // Predicated region
        $region13: #{image_encoder_forward.1} parent=11 // pred_check
          %p154 = pneg %p71
        $region14: #{image_encoder_forward.1} parent=11 // pred_check_branch
          %156 = sbr.rel (%p154) target = $region16
        $region15: #{image_encoder_forward.1} parent=11 // pred_region
          _
        $region16: #{image_encoder_forward.1} parent=11 // pred_fallthru
          _
        // Predicated region
        $region17: #{image_encoder_forward.1} parent=11 // pred_check
          %p157 = pneg %p92
        $region18: #{image_encoder_forward.1} parent=11 // pred_check_branch
          %159 = sbr.rel (%p157) target = $region20
        $region19: #{image_encoder_forward.1} parent=11 // pred_region
          _
        $region20: #{image_encoder_forward.1} parent=11 // pred_fallthru
          _
        // Predicated region
        $region21: #{image_encoder_forward.1} parent=11 // pred_check
          %p160 = pneg %p113
        $region22: #{image_encoder_forward.1} parent=11 // pred_check_branch
          %162 = sbr.rel (%p160) target = $region24
        $region23: #{image_encoder_forward.1} parent=11 // pred_region
          _
        $region24: #{image_encoder_forward.1} parent=11 // pred_fallthru
          _
      $region12: #{image_encoder_forward.1} parent=5 // pred_fallthru
        _
      %p163 = scmp.lt.s32.totalorder %s10, 2
      // Predicated region
      $region25: #{image_encoder_forward.1} parent=5 // pred_check
        %p164 = pneg %p163
      $region26: #{image_encoder_forward.1} parent=5 // pred_check_branch
        %166 = sbr.rel (%p164) target = $region28
      $region27: #{image_encoder_forward.1} parent=5 // pred_region
        // Predicated region
        $region29: #{image_encoder_forward.1} parent=27 // pred_check
          %p167 = pneg %p44
        $region30: #{image_encoder_forward.1} parent=27 // pred_check_branch
          %169 = sbr.rel (%p167) target = $region32
        $region31: #{image_encoder_forward.1} parent=27 // pred_region
          %s170 = sand.u32 %s34, 1
          %s171 = sand.u32 %s34, 1
          %s172 = smul.addr %s171, 8
          %s173 = scalar_lea.vmem [#allocation3], %s172
          %s174 = smul.u32 2, %s17
          %s175 = smul.addr %s174, 2
          %s176 = sadd.s32 %s18, %s175
          %s177 = smul.addr %s176, 4
          %s178 = scalar_lea.vmem %s0, %s177
          // Predicated region
          $region33: #{image_encoder_forward.1} parent=31 // pred_check
            _
          $region34: #{image_encoder_forward.1} parent=31 // pred_check_branch
            %180 = sbr.rel (0) target = $region36
          $region35: #{image_encoder_forward.1} parent=31 // pred_region
            // Predicated region
            $region37: #{image_encoder_forward.1} parent=35 // pred_check
              _
            $region38: #{image_encoder_forward.1} parent=35 // pred_check_branch
              %182 = sbr.rel target = $region40
            $region39: #{image_encoder_forward.1} parent=35 // pred_region
              // Predicated region
              $region52: #{image_encoder_forward.1} parent=39 // pred_check
                _
              $region53: #{image_encoder_forward.1} parent=39 // pred_check_branch
                %200 = sbr.rel (0) target = $region55
              $region54: #{image_encoder_forward.1} parent=39 // pred_region
                loop: start=0, step=1, limit=1
                $region56: #{image_encoder_forward.1} parent=54 // loop_pre_header
                  _
                $region57: #{image_encoder_forward.1} parent=54 // loop_header
                  %s202 = sphi 0, %s206
                  %p203 = scmp.ge.s32.totalorder %s202, 1
                  %s207 = sphi %s178, %s178
                  %s208 = sphi %s173, %s173
                $region58: #{image_encoder_forward.1} parent=54 // loop_header_branch
                  %205 = sbr.rel (%p203) target = $region62
                $region59: #{image_encoder_forward.1} parent=54 // loop_body
                  _
                $region60: #{image_encoder_forward.1} parent=54 // loop_footer
                  %s206 = sadd.s32 1, %s202
                $region61: #{image_encoder_forward.1} parent=54 // loop_footer_branch
                  %201 = sbr.rel target = $region57
                $region62: #{image_encoder_forward.1} parent=54 // loop_exit
                  _
                %s210 = ssub.s32 16, 1
                loop: start=0, step=1, limit=1
                $region63: #{image_encoder_forward.1} parent=54 // loop_pre_header
                  _
                $region64: #{image_encoder_forward.1} parent=54 // loop_header
                  %s212 = sphi 0, %s216
                  %p213 = scmp.ge.s32.totalorder %s212, 1
                  %s217 = sphi %s178, %s178
                  %s218 = sphi %s173, %s173
                $region65: #{image_encoder_forward.1} parent=54 // loop_header_branch
                  %215 = sbr.rel (%p213) target = $region69
                $region66: #{image_encoder_forward.1} parent=54 // loop_body
                  %v219 = vld [vmem:[%s217] sm:%s210]
                  %220 = vst [vmem:[%s218] sm:%s210] %v219
                  %v221 = vld [vmem:[%s217 + $0x8] sm:%s210]
                  %222 = vst [vmem:[%s218 + $0x4] sm:%s210] %v221
                $region67: #{image_encoder_forward.1} parent=54 // loop_footer
                  %s216 = sadd.s32 1, %s212
                $region68: #{image_encoder_forward.1} parent=54 // loop_footer_branch
                  %211 = sbr.rel target = $region64
                $region69: #{image_encoder_forward.1} parent=54 // loop_exit
                  _
              $region55: #{image_encoder_forward.1} parent=39 // pred_fallthru
                _
            $region40: #{image_encoder_forward.1} parent=35 // pred_fallthru
              _
            // Predicated region
            $region41: #{image_encoder_forward.1} parent=35 // pred_check
              _
            $region42: #{image_encoder_forward.1} parent=35 // pred_check_branch
              %184 = sbr.rel (0) target = $region44
            $region43: #{image_encoder_forward.1} parent=35 // pred_region
              %s186 = ssub.s32 16, 1
              loop: start=0, step=1, limit=1
              $region45: #{image_encoder_forward.1} parent=43 // loop_pre_header
                _
              $region46: #{image_encoder_forward.1} parent=43 // loop_header
                %s188 = sphi 0, %s192
                %p189 = scmp.ge.s32.totalorder %s188, 1
                %s193 = sphi %s178, %s178
                %s194 = sphi %s173, %s173
              $region47: #{image_encoder_forward.1} parent=43 // loop_header_branch
                %191 = sbr.rel (%p189) target = $region51
              $region48: #{image_encoder_forward.1} parent=43 // loop_body
                %v195 = vld [vmem:[%s193] sm:%s186]
                %196 = vst [vmem:[%s194] sm:%s186] %v195
                %v197 = vld [vmem:[%s193 + $0x8] sm:%s186]
                %198 = vst [vmem:[%s194 + $0x4] sm:%s186] %v197
              $region49: #{image_encoder_forward.1} parent=43 // loop_footer
                %s192 = sadd.s32 1, %s188
              $region50: #{image_encoder_forward.1} parent=43 // loop_footer_branch
                %187 = sbr.rel target = $region46
              $region51: #{image_encoder_forward.1} parent=43 // loop_exit
                _
            $region44: #{image_encoder_forward.1} parent=35 // pred_fallthru
              _
          $region36: #{image_encoder_forward.1} parent=31 // pred_fallthru
            _
          %223 = vnop
        $region32: #{image_encoder_forward.1} parent=27 // pred_fallthru
          _
      $region28: #{image_encoder_forward.1} parent=5 // pred_fallthru
        _
      %p224 = scmp.le.s32.totalorder 1, %s10
      %p225 = scmp.lt.s32.totalorder %s10, 3
      %p226 = pnand %p224, %p225
      %p227 = pneg %p226
      // Predicated region
      $region70: #{image_encoder_forward.1} parent=5 // pred_check
        _
      $region71: #{image_encoder_forward.1} parent=5 // pred_check_branch
        %229 = sbr.rel (%p226) target = $region73
      $region72: #{image_encoder_forward.1} parent=5 // pred_region
        %s230 = ssub.s32 %s10, 1
        %s231 = sand.u32 %s37, 1
        %s232 = sand.u32 %s37, 1
        %s233 = smul.addr %s232, 8
        %s234 = scalar_lea.vmem [#allocation3], %s233
        // Predicated region
        $region74: #{image_encoder_forward.1} parent=72 // pred_check
          %p235 = pneg %p50
        $region75: #{image_encoder_forward.1} parent=72 // pred_check_branch
          %237 = sbr.rel (%p235) target = $region77
        $region76: #{image_encoder_forward.1} parent=72 // pred_region
          _
        $region77: #{image_encoder_forward.1} parent=72 // pred_fallthru
          _
        %s238 = sand.u32 %s37, 1
        %s239 = sand.u32 %s37, 1
        %s240 = smul.addr %s239, 8
        %s241 = scalar_lea.vmem [#allocation3], %s240
        %p242 = pneg %p50
        %p243 = pneg %p47
        %p244 = pneg %p71
        %p245 = pneg %p68
        %p246 = pneg %p92
        %p247 = pneg %p89
        %p248 = pneg %p113
        %p249 = pneg %p110
        %p250 = pneg %p139
        %p251 = pneg %p136
        %p252 = scmp.lt.s32.totalorder %s19, 0
        %s253 = scalar_select %p252, %s19, 0
        %s254 = smul.addr %s253, 2
        %s255 = smul.addr %s254, 2
        %s256 = scalar_lea.vmem %s4, %s255
        %s257 = smul.u32 2, %s19
        %p258 = scmp.lt.s32.totalorder %s19, 0
        %s259 = scalar_select %p258, %s19, 0
        %s260 = smul.addr %s259, 2
        %s261 = smul.addr %s260, 2
        %s262 = scalar_lea.vmem %s4, %s261
        %p264 = scmp.eq.s32.totalorder %s20, 0
        // Predicated region
        $region78: #{image_encoder_forward.1} parent=72 // pred_check
          %p265 = pneg %p264
        $region79: #{image_encoder_forward.1} parent=72 // pred_check_branch
          %267 = sbr.rel (%p265) target = $region81
        $region80: #{image_encoder_forward.1} parent=72 // pred_region
          %268 = vst [vmem:[#allocation2] sm:$0xf] 0.0
        $region81: #{image_encoder_forward.1} parent=72 // pred_fallthru
          _
        %v269 = vld [vmem:[%s234] sm:$0xf]
        %v270 = vld [vmem:[%s234 + $0x4] sm:$0xf]
        %v271 = vunpack.c.l.bf16 %v269
        %v272 = vunpack.c.l.bf16 %v270
        %vm273 = vcmask 523264
        %v274 = vsel %vm273, %v271, 0.0
        %v275 = vrot.slane %v274, 4
        %v276 = vadd.f32 %v274, %v275
        %v277 = vrot.slane %v276, 2
        %v278 = vadd.f32 %v276, %v277
        %v279 = vrot.slane %v278, 1
        %v280 = vadd.f32 %v278, %v279
        %v281 = vsel %vm273, %v272, 0.0
        %v282 = vrot.slane %v281, 4
        %v283 = vadd.f32 %v281, %v282
        %v284 = vrot.slane %v283, 2
        %v285 = vadd.f32 %v283, %v284
        %v286 = vrot.slane %v285, 1
        %v287 = vadd.f32 %v285, %v286
        %v288 = vld [vmem:[#allocation2] sm:$0xf]
        %v289 = vpack.c.bf16 %v280, %v280
        %v290 = vpack.c.bf16 %v287, %v287
        %v291 = vld [vmem:[%s1] sm:$0xff]
        %v292 = vld [vmem:[%s1 + $0x8] sm:$0xff]
        %v293 = vld [vmem:[%s1 + $0x10] sm:$0xff]
        %v294 = vld [vmem:[%s1 + $0x18] sm:$0xff]
        %v295 = vld [vmem:[%s1 + $0x20] sm:$0xff]
        %v296 = vld [vmem:[%s1 + $0x28] sm:$0xff]
        %v297 = vld [vmem:[%s1 + $0x30] sm:$0xff]
        %v298 = vld [vmem:[%s1 + $0x38] sm:$0xff]
        %v301 = vunpack.c.l.b16 %v289
        %v302 = vunpack.c.l.b16 %v290
        %vm303 = vcmask 1041409
        %v304 = vsel %vm303, %v302, %v301
        %v305 = vpack.c.b16 %v304, %v304
        %v314 = vunpack.c.l.b16 %v291
        %v315 = vunpack.c.h.b16 %v291
        %v316 = vunpack.c.l.b16 %v292
        %v317 = vunpack.c.h.b16 %v292
        %v318 = vunpack.c.l.b16 %v293
        %v319 = vunpack.c.h.b16 %v293
        %v320 = vunpack.c.l.b16 %v294
        %v321 = vunpack.c.h.b16 %v294
        %v322 = vunpack.c.l.b16 %v295
        %v323 = vunpack.c.h.b16 %v295
        %v324 = vunpack.c.l.b16 %v296
        %v325 = vunpack.c.h.b16 %v296
        %v326 = vunpack.c.l.b16 %v297
        %v327 = vunpack.c.h.b16 %v297
        %v328 = vunpack.c.l.b16 %v298
        %v329 = vunpack.c.h.b16 %v298
        %v330 = vpack.c.b16 %v316, %v314
        %v331 = vpack.c.b16 %v317, %v315
        %v332 = vpack.c.b16 %v320, %v318
        %v333 = vpack.c.b16 %v321, %v319
        %v334 = vpack.c.b16 %v324, %v322
        %v335 = vpack.c.b16 %v325, %v323
        %v336 = vpack.c.b16 %v328, %v326
        %v337 = vpack.c.b16 %v329, %v327
        %v347 = vsel %vm273, %v305, 0
        %349 = vmatpush.bf16.msra.mxu0 0
        %350 = vmatpush.bf16.msra.mxu0 0
        %351 = vmatpush.bf16.msra.mxu0 0
        %352 = vmatpush.bf16.msra.mxu0 0
        %353 = vmatpush.bf16.msra.mxu0 %v336
        %354 = vmatpush.bf16.msra.mxu0 %v334
        %355 = vmatpush.bf16.msra.mxu0 %v332
        %356 = vmatpush.bf16.msra.mxu0 %v330
        %357 = vmatmul.bf16.gmra.mxu0 %v347
        %v358 = vpop.f32.mrf.mxu0
        %v359 = vadd.f32 0.0, %v358
        %v360 = vpop.f32.mrf.mxu0
        %361 = vdwg.mxu0
        %362 = vmatpush.bf16.msra.mxu0 0
        %363 = vmatpush.bf16.msra.mxu0 0
        %364 = vmatpush.bf16.msra.mxu0 0
        %365 = vmatpush.bf16.msra.mxu0 0
        %366 = vmatpush.bf16.msra.mxu0 %v337
        %367 = vmatpush.bf16.msra.mxu0 %v335
        %368 = vmatpush.bf16.msra.mxu0 %v333
        %369 = vmatpush.bf16.msra.mxu0 %v331
        %370 = vmatmul.bf16.gmra.mxu0 %v347
        %v371 = vpop.f32.mrf.mxu0
        %v372 = vadd.f32 0.0, %v371
        %v373 = vpop.f32.mrf.mxu0
        %374 = vdwg.mxu0
        %v377 = vrot.slane %v372, 6
        %vm378 = vcmask 1041408
        %v379 = vsel %vm378, %v359, %v377
        %v381 = vadd.f32 %v288, %v379
        %382 = vst [vmem:[#allocation2] sm:$0xf] %v381
        %p383 = scmp.eq.s32.totalorder %s20, 1
        // Predicated region
        $region82: #{image_encoder_forward.1} parent=72 // pred_check
          %p384 = pneg %p383
        $region83: #{image_encoder_forward.1} parent=72 // pred_check_branch
          %386 = sbr.rel (%p384) target = $region85
        $region84: #{image_encoder_forward.1} parent=72 // pred_region
          %v387 = vld [vmem:[#allocation2] sm:$0xf]
          %389 = vst [vmem:[#allocation1] ss:$4 sm:$0xff] %v387
          %v390 = vld.sshfl [vmem:[#allocation1] sm:$0xff pattern:$0x73625140]
          %v391 = vld.sshfl [vmem:[#allocation1 + $0x8] sm:$0xff pattern:$0x73625140]
          %v394 = vpack.c.bf16 %v390, %v390
          %v395 = vpack.c.bf16 %v391, %v391
          %v396 = vld [vmem:[%s2] sm:$0xff]
          %v397 = vld [vmem:[%s2 + $0x8] sm:$0xff]
          %v398 = vld [vmem:[%s2 + $0x10] sm:$0xff]
          %v399 = vld [vmem:[%s2 + $0x18] sm:$0xff]
          %v400 = vld [vmem:[%s2 + $0x20] sm:$0xff]
          %v401 = vld [vmem:[%s2 + $0x28] sm:$0xff]
          %v402 = vld [vmem:[%s2 + $0x30] sm:$0xff]
          %v403 = vld [vmem:[%s2 + $0x38] sm:$0xff]
          %v404 = vld [vmem:[%s2 + $0x40] sm:$0xff]
          %v405 = vld [vmem:[%s2 + $0x48] sm:$0xff]
          %v406 = vld [vmem:[%s2 + $0x50] sm:$0xff]
          %v407 = vld [vmem:[%s2 + $0x58] sm:$0xff]
          %v408 = vld [vmem:[%s2 + $0x60] sm:$0xff]
          %v409 = vld [vmem:[%s2 + $0x68] sm:$0xff]
          %v410 = vld [vmem:[%s2 + $0x70] sm:$0xff]
          %v411 = vld [vmem:[%s2 + $0x78] sm:$0xff]
          %v412 = vld [vmem:[%s2 + $0x80] sm:$0xff]
          %v413 = vld [vmem:[%s2 + $0x88] sm:$0xff]
          %v414 = vld [vmem:[%s2 + $0x90] sm:$0xff]
          %v415 = vld [vmem:[%s2 + $0x98] sm:$0xff]
          %v416 = vld [vmem:[%s2 + $0xa0] sm:$0xff]
          %v417 = vld [vmem:[%s2 + $0xa8] sm:$0xff]
          %v418 = vld [vmem:[%s2 + $0xb0] sm:$0xff]
          %v419 = vld [vmem:[%s2 + $0xb8] sm:$0xff]
          %v420 = vld [vmem:[%s2 + $0xc0] sm:$0xff]
          %v421 = vld [vmem:[%s2 + $0xc8] sm:$0xff]
          %v422 = vld [vmem:[%s2 + $0xd0] sm:$0xff]
          %v423 = vld [vmem:[%s2 + $0xd8] sm:$0xff]
          %v424 = vld [vmem:[%s2 + $0xe0] sm:$0xff]
          %v425 = vld [vmem:[%s2 + $0xe8] sm:$0xff]
          %v426 = vld [vmem:[%s2 + $0xf0] sm:$0xff]
          %v427 = vld [vmem:[%s2 + $0xf8] sm:$0xff]
          %v428 = vld [vmem:[%s3] sm:$0x3]
          %v430 = vperm.slane %v428, 0
          %v431 = vperm.slane %v428, 1
          %v466 = vunpack.c.l.b16 %v396
          %v467 = vunpack.c.h.b16 %v396
          %v468 = vunpack.c.l.b16 %v397
          %v469 = vunpack.c.h.b16 %v397
          %v470 = vunpack.c.l.b16 %v398
          %v471 = vunpack.c.h.b16 %v398
          %v472 = vunpack.c.l.b16 %v399
          %v473 = vunpack.c.h.b16 %v399
          %v474 = vunpack.c.l.b16 %v400
          %v475 = vunpack.c.h.b16 %v400
          %v476 = vunpack.c.l.b16 %v401
          %v477 = vunpack.c.h.b16 %v401
          %v478 = vunpack.c.l.b16 %v402
          %v479 = vunpack.c.h.b16 %v402
          %v480 = vunpack.c.l.b16 %v403
          %v481 = vunpack.c.h.b16 %v403
          %v482 = vunpack.c.l.b16 %v404
          %v483 = vunpack.c.h.b16 %v404
          %v484 = vunpack.c.l.b16 %v405
          %v485 = vunpack.c.h.b16 %v405
          %v486 = vunpack.c.l.b16 %v406
          %v487 = vunpack.c.h.b16 %v406
          %v488 = vunpack.c.l.b16 %v407
          %v489 = vunpack.c.h.b16 %v407
          %v490 = vunpack.c.l.b16 %v408
          %v491 = vunpack.c.h.b16 %v408
          %v492 = vunpack.c.l.b16 %v409
          %v493 = vunpack.c.h.b16 %v409
          %v494 = vunpack.c.l.b16 %v410
          %v495 = vunpack.c.h.b16 %v410
          %v496 = vunpack.c.l.b16 %v411
          %v497 = vunpack.c.h.b16 %v411
          %v498 = vunpack.c.l.b16 %v412
          %v499 = vunpack.c.h.b16 %v412
          %v500 = vunpack.c.l.b16 %v413
          %v501 = vunpack.c.h.b16 %v413
          %v502 = vunpack.c.l.b16 %v414
          %v503 = vunpack.c.h.b16 %v414
          %v504 = vunpack.c.l.b16 %v415
          %v505 = vunpack.c.h.b16 %v415
          %v506 = vunpack.c.l.b16 %v416
          %v507 = vunpack.c.h.b16 %v416
          %v508 = vunpack.c.l.b16 %v417
          %v509 = vunpack.c.h.b16 %v417
          %v510 = vunpack.c.l.b16 %v418
          %v511 = vunpack.c.h.b16 %v418
          %v512 = vunpack.c.l.b16 %v419
          %v513 = vunpack.c.h.b16 %v419
          %v514 = vunpack.c.l.b16 %v420
          %v515 = vunpack.c.h.b16 %v420
          %v516 = vunpack.c.l.b16 %v421
          %v517 = vunpack.c.h.b16 %v421
          %v518 = vunpack.c.l.b16 %v422
          %v519 = vunpack.c.h.b16 %v422
          %v520 = vunpack.c.l.b16 %v423
          %v521 = vunpack.c.h.b16 %v423
          %v522 = vunpack.c.l.b16 %v424
          %v523 = vunpack.c.h.b16 %v424
          %v524 = vunpack.c.l.b16 %v425
          %v525 = vunpack.c.h.b16 %v425
          %v526 = vunpack.c.l.b16 %v426
          %v527 = vunpack.c.h.b16 %v426
          %v528 = vunpack.c.l.b16 %v427
          %v529 = vunpack.c.h.b16 %v427
          %v530 = vpack.c.b16 %v468, %v466
          %v531 = vpack.c.b16 %v469, %v467
          %v532 = vpack.c.b16 %v472, %v470
          %v533 = vpack.c.b16 %v473, %v471
          %v534 = vpack.c.b16 %v476, %v474
          %v535 = vpack.c.b16 %v477, %v475
          %v536 = vpack.c.b16 %v480, %v478
          %v537 = vpack.c.b16 %v481, %v479
          %v538 = vpack.c.b16 %v484, %v482
          %v539 = vpack.c.b16 %v485, %v483
          %v540 = vpack.c.b16 %v488, %v486
          %v541 = vpack.c.b16 %v489, %v487
          %v542 = vpack.c.b16 %v492, %v490
          %v543 = vpack.c.b16 %v493, %v491
          %v544 = vpack.c.b16 %v496, %v494
          %v545 = vpack.c.b16 %v497, %v495
          %v546 = vpack.c.b16 %v500, %v498
          %v547 = vpack.c.b16 %v501, %v499
          %v548 = vpack.c.b16 %v504, %v502
          %v549 = vpack.c.b16 %v505, %v503
          %v550 = vpack.c.b16 %v508, %v506
          %v551 = vpack.c.b16 %v509, %v507
          %v552 = vpack.c.b16 %v512, %v510
          %v553 = vpack.c.b16 %v513, %v511
          %v554 = vpack.c.b16 %v516, %v514
          %v555 = vpack.c.b16 %v517, %v515
          %v556 = vpack.c.b16 %v520, %v518
          %v557 = vpack.c.b16 %v521, %v519
          %v558 = vpack.c.b16 %v524, %v522
          %v559 = vpack.c.b16 %v525, %v523
          %v560 = vpack.c.b16 %v528, %v526
          %v561 = vpack.c.b16 %v529, %v527
          %594 = vmatpush.bf16.msra.mxu0 %v544
          %595 = vmatpush.bf16.msra.mxu0 %v542
          %596 = vmatpush.bf16.msra.mxu0 %v540
          %597 = vmatpush.bf16.msra.mxu0 %v538
          %598 = vmatpush.bf16.msra.mxu0 %v536
          %599 = vmatpush.bf16.msra.mxu0 %v534
          %600 = vmatpush.bf16.msra.mxu0 %v532
          %601 = vmatpush.bf16.msra.mxu0 %v530
          %602 = vmatmul.bf16.gmra.mxu0 %v394
          %v603 = vpop.f32.mrf.mxu0
          %v604 = vadd.f32 %v430, %v603
          %v605 = vpop.f32.mrf.mxu0
          %606 = vdwg.mxu0
          %607 = vmatpush.bf16.msra.mxu0 %v560
          %608 = vmatpush.bf16.msra.mxu0 %v558
          %609 = vmatpush.bf16.msra.mxu0 %v556
          %610 = vmatpush.bf16.msra.mxu0 %v554
          %611 = vmatpush.bf16.msra.mxu0 %v552
          %612 = vmatpush.bf16.msra.mxu0 %v550
          %613 = vmatpush.bf16.msra.mxu0 %v548
          %614 = vmatpush.bf16.msra.mxu0 %v546
          %615 = vmatmul.bf16.gmra.mxu0 %v395
          %v616 = vpop.f32.mrf.mxu0
          %v617 = vadd.f32 %v604, %v616
          %v618 = vpop.f32.mrf.mxu0
          %619 = vdwg.mxu0
          %620 = vmatpush.bf16.msra.mxu0 %v545
          %621 = vmatpush.bf16.msra.mxu0 %v543
          %622 = vmatpush.bf16.msra.mxu0 %v541
          %623 = vmatpush.bf16.msra.mxu0 %v539
          %624 = vmatpush.bf16.msra.mxu0 %v537
          %625 = vmatpush.bf16.msra.mxu0 %v535
          %626 = vmatpush.bf16.msra.mxu0 %v533
          %627 = vmatpush.bf16.msra.mxu0 %v531
          %628 = vmatmul.bf16.gmra.mxu0 %v394
          %v629 = vpop.f32.mrf.mxu0
          %v630 = vadd.f32 %v431, %v629
          %v631 = vpop.f32.mrf.mxu0
          %632 = vdwg.mxu0
          %633 = vmatpush.bf16.msra.mxu0 %v561
          %634 = vmatpush.bf16.msra.mxu0 %v559
          %635 = vmatpush.bf16.msra.mxu0 %v557
          %636 = vmatpush.bf16.msra.mxu0 %v555
          %637 = vmatpush.bf16.msra.mxu0 %v553
          %638 = vmatpush.bf16.msra.mxu0 %v551
          %639 = vmatpush.bf16.msra.mxu0 %v549
          %640 = vmatpush.bf16.msra.mxu0 %v547
          %641 = vmatmul.bf16.gmra.mxu0 %v395
          %v642 = vpop.f32.mrf.mxu0
          %v643 = vadd.f32 %v630, %v642
          %v644 = vpop.f32.mrf.mxu0
          %645 = vdwg.mxu0
          %v648 = vrot.slane %v643, 6
          %v649 = vsel %vm378, %v617, %v648
          %651 = vst [vmem:[%s262] sm:$0xf] %v649
        $region85: #{image_encoder_forward.1} parent=72 // pred_fallthru
          _
        %p652 = scmp.lt.s32.totalorder %s19, 0
        %s653 = scalar_select %p652, %s19, 0
        %s654 = smul.addr %s653, 2
        %s655 = smul.addr %s654, 2
        %s656 = scalar_lea.vmem %s4, %s655
        // Predicated region
        $region86: #{image_encoder_forward.1} parent=72 // pred_check
          %p657 = pneg %p136
        $region87: #{image_encoder_forward.1} parent=72 // pred_check_branch
          %659 = sbr.rel (%p657) target = $region89
        $region88: #{image_encoder_forward.1} parent=72 // pred_region
          _
        $region89: #{image_encoder_forward.1} parent=72 // pred_fallthru
          _
        // Predicated region
        $region90: #{image_encoder_forward.1} parent=72 // pred_check
          %p660 = pneg %p136
        $region91: #{image_encoder_forward.1} parent=72 // pred_check_branch
          %662 = sbr.rel (%p660) target = $region93
        $region92: #{image_encoder_forward.1} parent=72 // pred_region
          %p663 = scmp.lt.s32.totalorder %s19, 0
          %s664 = scalar_select %p663, %s19, 0
          %s665 = smul.addr %s664, 2
          %s666 = smul.addr %s665, 2
          %s667 = scalar_lea.vmem %s4, %s666
        $region93: #{image_encoder_forward.1} parent=72 // pred_fallthru
          _
      $region73: #{image_encoder_forward.1} parent=5 // pred_fallthru
        _
      %p668 = scmp.le.s32.totalorder 2, %s10
      // Predicated region
      $region94: #{image_encoder_forward.1} parent=5 // pred_check
        %p669 = pneg %p668
      $region95: #{image_encoder_forward.1} parent=5 // pred_check_branch
        %671 = sbr.rel (%p669) target = $region97
      $region96: #{image_encoder_forward.1} parent=5 // pred_region
        %s672 = ssub.s32 %s10, 2
      $region97: #{image_encoder_forward.1} parent=5 // pred_fallthru
        _
    $region6: #{image_encoder_forward.1} parent=1 // loop_footer
      %s14 = sadd.s32 1, %s10
    $region7: #{image_encoder_forward.1} parent=1 // loop_footer_branch
      %9 = sbr.rel target = $region3
    $region8: #{image_encoder_forward.1} parent=1 // loop_exit
      _

// kernel: image_encoder_forward.1
$region0: #{image_encoder_forward.1}
  #allocation0 [shape = 'u32[]', space=smem, size = 0x4, offset = 0x4, fixed_abs, tag = 'smem constant byte address 0x4 - core index']
  #allocation1 [shape = 'u32[72,128]{1,0:T(1,128)}', space=vmem, size = 0x9000, scoped, tag = 'internal scratch']
  #allocation2 [shape = 'f32[2,256]{1,0:T(2,128)}', space=vmem, size = 0x800, scoped, tag = 'scratch operand']
  %s0 = inlined_call_operand.vmem [shape: bf16[2,16,64], index: 0, kind: input, shape index: {}]
  %s1 = inlined_call_operand.vmem [shape: bf16[64,256], index: 1, kind: input, shape index: {}]
  %s2 = inlined_call_operand.vmem [shape: bf16[256,256], index: 2, kind: input, shape index: {}]
  %s3 = inlined_call_operand.vmem [shape: f32[1,256], index: 3, kind: input, shape index: {}]
  %s4 = inlined_call_operand.vmem [shape: f32[2,256], index: 4, kind: output, shape index: {}]
  %s5 = sld [smem:[#allocation0]]
  $region98: #{image_encoder_forward.1} parent=0
    _
  %s7 = ssub.s32 1, %s5
  %s8 = scalar_select 0, %s7, %s5
  $region1: #{image_encoder_forward.1} parent=0
    #allocation3 [shape = 'u8[8192]{0}', space=vmem, size = 0x2000, scoped, tag = 'input window, operand 0']
    loop: start=0, step=1, limit=4
    $region2: #{image_encoder_forward.1} parent=1 // loop_pre_header
      _
    $region3: #{image_encoder_forward.1} parent=1 // loop_header
      %s10 = sphi 0, %s14
      %p11 = scmp.ge.s32.totalorder %s10, 4
      %s17 = sphi 0, %s29
      %s18 = sphi 0, %s25
      %s19 = sphi 0, %s17
      %s20 = sphi 0, %s18
      %s21 = sphi 0, %s19
      %s22 = sphi 0, %s20
      %s34 = sphi 0, %s36
      %s37 = sphi 0, %s34
      %s38 = sphi 0, %s37
      %s54 = sphi 0, %s38
      %s58 = sphi 0, %s58
      %s60 = sphi 0, %s58
      %s61 = sphi 0, %s60
      %s75 = sphi 0, %s61
      %s79 = sphi 0, %s79
      %s81 = sphi 0, %s79
      %s82 = sphi 0, %s81
      %s96 = sphi 0, %s82
      %s100 = sphi 0, %s100
      %s102 = sphi 0, %s100
      %s103 = sphi 0, %s102
      %s117 = sphi 0, %s103
      %s123 = sphi 0, %s125
      %s126 = sphi 0, %s123
      %s127 = sphi 0, %s126
      %s143 = sphi 0, %s127
    $region4: #{image_encoder_forward.1} parent=1 // loop_header_branch
      %13 = sbr.rel (%p11) target = $region8
    $region5: #{image_encoder_forward.1} parent=1 // loop_body
      %s15 = ssub.s32 %s10, 1
      %s16 = ssub.s32 %s10, 2
      %s23 = sadd.s32 1, %s18
      %p24 = scmp.ge.s32.totalorder %s23, 2
      %s25 = scalar_select %p24, 0, %s23
      %s26 = sadd.s32 1, %s17
      %s27 = scalar_select %p24, %s26, %s17
      %p28 = scmp.ge.s32.totalorder %s27, 1
      %s29 = scalar_select %p28, 0, %s27
      %s30 = ssub.s32 %s17, %s29
      %s31 = ssub.s32 %s18, %s25
      %s32 = sor.u32 %s30, %s31
      %p33 = scmp.eq.s32.totalorder %s32, 0
      %s35 = sadd.s32 %s34, 1
      %s36 = scalar_select %p33, %s34, %s35
      %p39 = pneg %p33
      %p40 = scmp.eq.s32.totalorder %s10, 1
      %p41 = por %p39, %p40
      %p42 = scmp.ne.s32.totalorder %s34, %s37
      %p43 = scmp.eq.s32.totalorder %s10, 0
      %p44 = por %p42, %p43
      %p45 = scmp.ne.s32.totalorder %s34, %s37
      %p46 = scmp.eq.s32.totalorder %s15, 1
      %p47 = por %p45, %p46
      %p48 = scmp.ne.s32.totalorder %s37, %s38
      %p49 = scmp.eq.s32.totalorder %s15, 0
      %p50 = por %p48, %p49
      %p51 = scmp.ne.s32.totalorder %s37, %s38
      %p52 = scmp.eq.s32.totalorder %s16, 1
      %p53 = por %p51, %p52
      %p55 = scmp.ne.s32.totalorder %s38, %s54
      %p56 = scmp.eq.s32.totalorder %s16, 0
      %p57 = por %p55, %p56
      %s59 = sadd.s32 %s58, 1
      %p62 = scmp.eq.s32.totalorder %s10, 1
      %p63 = scmp.ne.s32.totalorder %s58, %s60
      %p64 = scmp.eq.s32.totalorder %s10, 0
      %p65 = por %p63, %p64
      %p66 = scmp.ne.s32.totalorder %s58, %s60
      %p67 = scmp.eq.s32.totalorder %s15, 1
      %p68 = por %p66, %p67
      %p69 = scmp.ne.s32.totalorder %s60, %s61
      %p70 = scmp.eq.s32.totalorder %s15, 0
      %p71 = por %p69, %p70
      %p72 = scmp.ne.s32.totalorder %s60, %s61
      %p73 = scmp.eq.s32.totalorder %s16, 1
      %p74 = por %p72, %p73
      %p76 = scmp.ne.s32.totalorder %s61, %s75
      %p77 = scmp.eq.s32.totalorder %s16, 0
      %p78 = por %p76, %p77
      %s80 = sadd.s32 %s79, 1
      %p83 = scmp.eq.s32.totalorder %s10, 1
      %p84 = scmp.ne.s32.totalorder %s79, %s81
      %p85 = scmp.eq.s32.totalorder %s10, 0
      %p86 = por %p84, %p85
      %p87 = scmp.ne.s32.totalorder %s79, %s81
      %p88 = scmp.eq.s32.totalorder %s15, 1
      %p89 = por %p87, %p88
      %p90 = scmp.ne.s32.totalorder %s81, %s82
      %p91 = scmp.eq.s32.totalorder %s15, 0
      %p92 = por %p90, %p91
      %p93 = scmp.ne.s32.totalorder %s81, %s82
      %p94 = scmp.eq.s32.totalorder %s16, 1
      %p95 = por %p93, %p94
      %p97 = scmp.ne.s32.totalorder %s82, %s96
      %p98 = scmp.eq.s32.totalorder %s16, 0
      %p99 = por %p97, %p98
      %s101 = sadd.s32 %s100, 1
      %p104 = scmp.eq.s32.totalorder %s10, 1
      %p105 = scmp.ne.s32.totalorder %s100, %s102
      %p106 = scmp.eq.s32.totalorder %s10, 0
      %p107 = por %p105, %p106
      %p108 = scmp.ne.s32.totalorder %s100, %s102
      %p109 = scmp.eq.s32.totalorder %s15, 1
      %p110 = por %p108, %p109
      %p111 = scmp.ne.s32.totalorder %s102, %s103
      %p112 = scmp.eq.s32.totalorder %s15, 0
      %p113 = por %p111, %p112
      %p114 = scmp.ne.s32.totalorder %s102, %s103
      %p115 = scmp.eq.s32.totalorder %s16, 1
      %p116 = por %p114, %p115
      %p118 = scmp.ne.s32.totalorder %s103, %s117
      %p119 = scmp.eq.s32.totalorder %s16, 0
      %p120 = por %p118, %p119
      %s121 = ssub.s32 %s17, %s29
      %p122 = scmp.eq.s32.totalorder %s121, 0
      %s124 = sadd.s32 %s123, 1
      %s125 = scalar_select %p122, %s123, %s124
      %p128 = pneg %p122
      %p129 = scmp.eq.s32.totalorder %s10, 1
      %p130 = por %p128, %p129
      %p131 = scmp.ne.s32.totalorder %s123, %s126
      %p132 = scmp.eq.s32.totalorder %s10, 0
      %p133 = por %p131, %p132
      %p134 = scmp.ne.s32.totalorder %s123, %s126
      %p135 = scmp.eq.s32.totalorder %s15, 1
      %p136 = por %p134, %p135
      %p137 = scmp.ne.s32.totalorder %s126, %s127
      %p138 = scmp.eq.s32.totalorder %s15, 0
      %p139 = por %p137, %p138
      %p140 = scmp.ne.s32.totalorder %s126, %s127
      %p141 = scmp.eq.s32.totalorder %s16, 1
      %p142 = por %p140, %p141
      %p144 = scmp.ne.s32.totalorder %s127, %s143
      %p145 = scmp.eq.s32.totalorder %s16, 0
      %p146 = por %p144, %p145
      %p147 = scmp.le.s32.totalorder 1, %s10
      %p148 = scmp.lt.s32.totalorder %s10, 3
      %p149 = pnand %p147, %p148
      %p150 = pneg %p149
      // Predicated region
      $region9: #{image_encoder_forward.1} parent=5 // pred_check
        _
      $region10: #{image_encoder_forward.1} parent=5 // pred_check_branch
        %152 = sbr.rel (%p149) target = $region12
      $region11: #{image_encoder_forward.1} parent=5 // pred_region
        %s153 = ssub.s32 %s10, 1
        // Predicated region
        $region13: #{image_encoder_forward.1} parent=11 // pred_check
          %p154 = pneg %p71
        $region14: #{image_encoder_forward.1} parent=11 // pred_check_branch
          %156 = sbr.rel (%p154) target = $region16
        $region15: #{image_encoder_forward.1} parent=11 // pred_region
          _
        $region16: #{image_encoder_forward.1} parent=11 // pred_fallthru
          _
        // Predicated region
        $region17: #{image_encoder_forward.1} parent=11 // pred_check
          %p157 = pneg %p92
        $region18: #{image_encoder_forward.1} parent=11 // pred_check_branch
          %159 = sbr.rel (%p157) target = $region20
        $region19: #{image_encoder_forward.1} parent=11 // pred_region
          _
        $region20: #{image_encoder_forward.1} parent=11 // pred_fallthru
          _
        // Predicated region
        $region21: #{image_encoder_forward.1} parent=11 // pred_check
          %p160 = pneg %p113
        $region22: #{image_encoder_forward.1} parent=11 // pred_check_branch
          %162 = sbr.rel (%p160) target = $region24
        $region23: #{image_encoder_forward.1} parent=11 // pred_region
          _
        $region24: #{image_encoder_forward.1} parent=11 // pred_fallthru
          _
      $region12: #{image_encoder_forward.1} parent=5 // pred_fallthru
        _
      %p163 = scmp.lt.s32.totalorder %s10, 2
      // Predicated region
      $region25: #{image_encoder_forward.1} parent=5 // pred_check
        %p164 = pneg %p163
      $region26: #{image_encoder_forward.1} parent=5 // pred_check_branch
        %166 = sbr.rel (%p164) target = $region28
      $region27: #{image_encoder_forward.1} parent=5 // pred_region
        // Predicated region
        $region29: #{image_encoder_forward.1} parent=27 // pred_check
          %p167 = pneg %p44
        $region30: #{image_encoder_forward.1} parent=27 // pred_check_branch
          %169 = sbr.rel (%p167) target = $region32
        $region31: #{image_encoder_forward.1} parent=27 // pred_region
          %s170 = sand.u32 %s34, 1
          %s171 = sand.u32 %s34, 1
          %s172 = smul.addr %s171, 8
          %s173 = scalar_lea.vmem [#allocation3], %s172
          %s174 = smul.u32 2, %s17
          %s175 = smul.addr %s174, 2
          %s176 = sadd.s32 %s18, %s175
          %s177 = smul.addr %s176, 4
          %s178 = scalar_lea.vmem %s0, %s177
          // Predicated region
          $region33: #{image_encoder_forward.1} parent=31 // pred_check
            _
          $region34: #{image_encoder_forward.1} parent=31 // pred_check_branch
            %180 = sbr.rel (0) target = $region36
          $region35: #{image_encoder_forward.1} parent=31 // pred_region
            // Predicated region
            $region37: #{image_encoder_forward.1} parent=35 // pred_check
              _
            $region38: #{image_encoder_forward.1} parent=35 // pred_check_branch
              %182 = sbr.rel target = $region40
            $region39: #{image_encoder_forward.1} parent=35 // pred_region
              // Predicated region
              $region52: #{image_encoder_forward.1} parent=39 // pred_check
                _
              $region53: #{image_encoder_forward.1} parent=39 // pred_check_branch
                %200 = sbr.rel (0) target = $region55
              $region54: #{image_encoder_forward.1} parent=39 // pred_region
                loop: start=0, step=1, limit=1
                $region56: #{image_encoder_forward.1} parent=54 // loop_pre_header
                  _
                $region57: #{image_encoder_forward.1} parent=54 // loop_header
                  %s202 = sphi 0, %s206
                  %p203 = scmp.ge.s32.totalorder %s202, 1
                  %s207 = sphi %s178, %s178
                  %s208 = sphi %s173, %s173
                $region58: #{image_encoder_forward.1} parent=54 // loop_header_branch
                  %205 = sbr.rel (%p203) target = $region62
                $region59: #{image_encoder_forward.1} parent=54 // loop_body
                  _
                $region60: #{image_encoder_forward.1} parent=54 // loop_footer
                  %s206 = sadd.s32 1, %s202
                $region61: #{image_encoder_forward.1} parent=54 // loop_footer_branch
                  %201 = sbr.rel target = $region57
                $region62: #{image_encoder_forward.1} parent=54 // loop_exit
                  _
                %s210 = ssub.s32 16, 1
                loop: start=0, step=1, limit=1
                $region63: #{image_encoder_forward.1} parent=54 // loop_pre_header
                  _
                $region64: #{image_encoder_forward.1} parent=54 // loop_header
                  %s212 = sphi 0, %s216
                  %p213 = scmp.ge.s32.totalorder %s212, 1
                  %s217 = sphi %s178, %s178
                  %s218 = sphi %s173, %s173
                $region65: #{image_encoder_forward.1} parent=54 // loop_header_branch
                  %215 = sbr.rel (%p213) target = $region69
                $region66: #{image_encoder_forward.1} parent=54 // loop_body
                  %v219 = vld [vmem:[%s217] sm:%s210]
                  %220 = vst [vmem:[%s218] sm:%s210] %v219
                  %v221 = vld [vmem:[%s217 + $0x8] sm:%s210]
                  %222 = vst [vmem:[%s218 + $0x4] sm:%s210] %v221
                $region67: #{image_encoder_forward.1} parent=54 // loop_footer
                  %s216 = sadd.s32 1, %s212
                $region68: #{image_encoder_forward.1} parent=54 // loop_footer_branch
                  %211 = sbr.rel target = $region64
                $region69: #{image_encoder_forward.1} parent=54 // loop_exit
                  _
              $region55: #{image_encoder_forward.1} parent=39 // pred_fallthru
                _
            $region40: #{image_encoder_forward.1} parent=35 // pred_fallthru
              _
            // Predicated region
            $region41: #{image_encoder_forward.1} parent=35 // pred_check
              _
            $region42: #{image_encoder_forward.1} parent=35 // pred_check_branch
              %184 = sbr.rel (0) target = $region44
            $region43: #{image_encoder_forward.1} parent=35 // pred_region
              %s186 = ssub.s32 16, 1
              loop: start=0, step=1, limit=1
              $region45: #{image_encoder_forward.1} parent=43 // loop_pre_header
                _
              $region46: #{image_encoder_forward.1} parent=43 // loop_header
                %s188 = sphi 0, %s192
                %p189 = scmp.ge.s32.totalorder %s188, 1
                %s193 = sphi %s178, %s178
                %s194 = sphi %s173, %s173
              $region47: #{image_encoder_forward.1} parent=43 // loop_header_branch
                %191 = sbr.rel (%p189) target = $region51
              $region48: #{image_encoder_forward.1} parent=43 // loop_body
                %v195 = vld [vmem:[%s193] sm:%s186]
                %196 = vst [vmem:[%s194] sm:%s186] %v195
                %v197 = vld [vmem:[%s193 + $0x8] sm:%s186]
                %198 = vst [vmem:[%s194 + $0x4] sm:%s186] %v197
              $region49: #{image_encoder_forward.1} parent=43 // loop_footer
                %s192 = sadd.s32 1, %s188
              $region50: #{image_encoder_forward.1} parent=43 // loop_footer_branch
                %187 = sbr.rel target = $region46
              $region51: #{image_encoder_forward.1} parent=43 // loop_exit
                _
            $region44: #{image_encoder_forward.1} parent=35 // pred_fallthru
              _
          $region36: #{image_encoder_forward.1} parent=31 // pred_fallthru
            _
          %223 = vnop
        $region32: #{image_encoder_forward.1} parent=27 // pred_fallthru
          _
      $region28: #{image_encoder_forward.1} parent=5 // pred_fallthru
        _
      %p224 = scmp.le.s32.totalorder 1, %s10
      %p225 = scmp.lt.s32.totalorder %s10, 3
      %p226 = pnand %p224, %p225
      %p227 = pneg %p226
      // Predicated region
      $region70: #{image_encoder_forward.1} parent=5 // pred_check
        _
      $region71: #{image_encoder_forward.1} parent=5 // pred_check_branch
        %229 = sbr.rel (%p226) target = $region73
      $region72: #{image_encoder_forward.1} parent=5 // pred_region
        %s230 = ssub.s32 %s10, 1
        %s231 = sand.u32 %s37, 1
        %s232 = sand.u32 %s37, 1
        %s233 = smul.addr %s232, 8
        %s234 = scalar_lea.vmem [#allocation3], %s233
        // Predicated region
        $region74: #{image_encoder_forward.1} parent=72 // pred_check
          %p235 = pneg %p50
        $region75: #{image_encoder_forward.1} parent=72 // pred_check_branch
          %237 = sbr.rel (%p235) target = $region77
        $region76: #{image_encoder_forward.1} parent=72 // pred_region
          _
        $region77: #{image_encoder_forward.1} parent=72 // pred_fallthru
          _
        %s238 = sand.u32 %s37, 1
        %s239 = sand.u32 %s37, 1
        %s240 = smul.addr %s239, 8
        %s241 = scalar_lea.vmem [#allocation3], %s240
        %p242 = pneg %p50
        %p243 = pneg %p47
        %p244 = pneg %p71
        %p245 = pneg %p68
        %p246 = pneg %p92
        %p247 = pneg %p89
        %p248 = pneg %p113
        %p249 = pneg %p110
        %p250 = pneg %p139
        %p251 = pneg %p136
        %p252 = scmp.lt.s32.totalorder %s19, 0
        %s253 = scalar_select %p252, %s19, 0
        %s254 = smul.addr %s253, 2
        %s255 = smul.addr %s254, 2
        %s256 = scalar_lea.vmem %s4, %s255
        %s257 = smul.u32 2, %s19
        %p258 = scmp.lt.s32.totalorder %s19, 0
        %s259 = scalar_select %p258, %s19, 0
        %s260 = smul.addr %s259, 2
        %s261 = smul.addr %s260, 2
        %s262 = scalar_lea.vmem %s4, %s261
        %p264 = scmp.eq.s32.totalorder %s20, 0
        // Predicated region
        $region78: #{image_encoder_forward.1} parent=72 // pred_check
          %p265 = pneg %p264
        $region79: #{image_encoder_forward.1} parent=72 // pred_check_branch
          %267 = sbr.rel (%p265) target = $region81
        $region80: #{image_encoder_forward.1} parent=72 // pred_region
          %268 = vst [vmem:[#allocation2] sm:$0xf] 0.0
        $region81: #{image_encoder_forward.1} parent=72 // pred_fallthru
          _
        %v269 = vld [vmem:[%s234] sm:$0xf]
        %v270 = vld [vmem:[%s234 + $0x4] sm:$0xf]
        %v271 = vunpack.c.l.bf16 %v269
        %v272 = vunpack.c.l.bf16 %v270
        %vm273 = vcmask 523264
        %v274 = vsel %vm273, %v271, 0.0
        %v275 = vrot.slane %v274, 4
        %v276 = vadd.f32 %v274, %v275
        %v277 = vrot.slane %v276, 2
        %v278 = vadd.f32 %v276, %v277
        %v279 = vrot.slane %v278, 1
        %v280 = vadd.f32 %v278, %v279
        %v281 = vsel %vm273, %v272, 0.0
        %v282 = vrot.slane %v281, 4
        %v283 = vadd.f32 %v281, %v282
        %v284 = vrot.slane %v283, 2
        %v285 = vadd.f32 %v283, %v284
        %v286 = vrot.slane %v285, 1
        %v287 = vadd.f32 %v285, %v286
        %v288 = vld [vmem:[#allocation2] sm:$0xf]
        %v289 = vpack.c.bf16 %v280, %v280
        %v290 = vpack.c.bf16 %v287, %v287
        %v291 = vld [vmem:[%s1] sm:$0xff]
        %v292 = vld [vmem:[%s1 + $0x8] sm:$0xff]
        %v293 = vld [vmem:[%s1 + $0x10] sm:$0xff]
        %v294 = vld [vmem:[%s1 + $0x18] sm:$0xff]
        %v295 = vld [vmem:[%s1 + $0x20] sm:$0xff]
        %v296 = vld [vmem:[%s1 + $0x28] sm:$0xff]
        %v297 = vld [vmem:[%s1 + $0x30] sm:$0xff]
        %v298 = vld [vmem:[%s1 + $0x38] sm:$0xff]
        %v301 = vunpack.c.l.b16 %v289
        %v302 = vunpack.c.l.b16 %v290
        %vm303 = vcmask 1041409
        %v304 = vsel %vm303, %v302, %v301
        %v305 = vpack.c.b16 %v304, %v304
        %v314 = vunpack.c.l.b16 %v291
        %v315 = vunpack.c.h.b16 %v291
        %v316 = vunpack.c.l.b16 %v292
        %v317 = vunpack.c.h.b16 %v292
        %v318 = vunpack.c.l.b16 %v293
        %v319 = vunpack.c.h.b16 %v293
        %v320 = vunpack.c.l.b16 %v294
        %v321 = vunpack.c.h.b16 %v294
        %v322 = vunpack.c.l.b16 %v295
        %v323 = vunpack.c.h.b16 %v295
        %v324 = vunpack.c.l.b16 %v296
        %v325 = vunpack.c.h.b16 %v296
        %v326 = vunpack.c.l.b16 %v297
        %v327 = vunpack.c.h.b16 %v297
        %v328 = vunpack.c.l.b16 %v298
        %v329 = vunpack.c.h.b16 %v298
        %v330 = vpack.c.b16 %v316, %v314
        %v331 = vpack.c.b16 %v317, %v315
        %v332 = vpack.c.b16 %v320, %v318
        %v333 = vpack.c.b16 %v321, %v319
        %v334 = vpack.c.b16 %v324, %v322
        %v335 = vpack.c.b16 %v325, %v323
        %v336 = vpack.c.b16 %v328, %v326
        %v337 = vpack.c.b16 %v329, %v327
        %v347 = vsel %vm273, %v305, 0
        %349 = vmatpush.bf16.msra.mxu0 0
        %350 = vmatpush.bf16.msra.mxu0 0
        %351 = vmatpush.bf16.msra.mxu0 0
        %352 = vmatpush.bf16.msra.mxu0 0
        %353 = vmatpush.bf16.msra.mxu0 %v336
        %354 = vmatpush.bf16.msra.mxu0 %v334
        %355 = vmatpush.bf16.msra.mxu0 %v332
        %356 = vmatpush.bf16.msra.mxu0 %v330
        %357 = vmatmul.bf16.gmra.mxu0 %v347
        %v358 = vpop.f32.mrf.mxu0
        %v359 = vadd.f32 0.0, %v358
        %v360 = vpop.f32.mrf.mxu0
        %361 = vdwg.mxu0
        %362 = vmatpush.bf16.msra.mxu0 0
        %363 = vmatpush.bf16.msra.mxu0 0
        %364 = vmatpush.bf16.msra.mxu0 0
        %365 = vmatpush.bf16.msra.mxu0 0
        %366 = vmatpush.bf16.msra.mxu0 %v337
        %367 = vmatpush.bf16.msra.mxu0 %v335
        %368 = vmatpush.bf16.msra.mxu0 %v333
        %369 = vmatpush.bf16.msra.mxu0 %v331
        %370 = vmatmul.bf16.gmra.mxu0 %v347
        %v371 = vpop.f32.mrf.mxu0
        %v372 = vadd.f32 0.0, %v371
        %v373 = vpop.f32.mrf.mxu0
        %374 = vdwg.mxu0
        %v377 = vrot.slane %v372, 6
        %vm378 = vcmask 1041408
        %v379 = vsel %vm378, %v359, %v377
        %v381 = vadd.f32 %v288, %v379
        %382 = vst [vmem:[#allocation2] sm:$0xf] %v381
        %p383 = scmp.eq.s32.totalorder %s20, 1
        // Predicated region
        $region82: #{image_encoder_forward.1} parent=72 // pred_check
          %p384 = pneg %p383
        $region83: #{image_encoder_forward.1} parent=72 // pred_check_branch
          %386 = sbr.rel (%p384) target = $region85
        $region84: #{image_encoder_forward.1} parent=72 // pred_region
          %v387 = vld [vmem:[#allocation2] sm:$0xf]
          %389 = vst [vmem:[#allocation1] ss:$4 sm:$0xff] %v387
          %v390 = vld.sshfl [vmem:[#allocation1] sm:$0xff pattern:$0x73625140]
          %v391 = vld.sshfl [vmem:[#allocation1 + $0x8] sm:$0xff pattern:$0x73625140]
          %v394 = vpack.c.bf16 %v390, %v390
          %v395 = vpack.c.bf16 %v391, %v391
          %v396 = vld [vmem:[%s2] sm:$0xff]
          %v397 = vld [vmem:[%s2 + $0x8] sm:$0xff]
          %v398 = vld [vmem:[%s2 + $0x10] sm:$0xff]
          %v399 = vld [vmem:[%s2 + $0x18] sm:$0xff]
          %v400 = vld [vmem:[%s2 + $0x20] sm:$0xff]
          %v401 = vld [vmem:[%s2 + $0x28] sm:$0xff]
          %v402 = vld [vmem:[%s2 + $0x30] sm:$0xff]
          %v403 = vld [vmem:[%s2 + $0x38] sm:$0xff]
          %v404 = vld [vmem:[%s2 + $0x40] sm:$0xff]
          %v405 = vld [vmem:[%s2 + $0x48] sm:$0xff]
          %v406 = vld [vmem:[%s2 + $0x50] sm:$0xff]
          %v407 = vld [vmem:[%s2 + $0x58] sm:$0xff]
          %v408 = vld [vmem:[%s2 + $0x60] sm:$0xff]
          %v409 = vld [vmem:[%s2 + $0x68] sm:$0xff]
          %v410 = vld [vmem:[%s2 + $0x70] sm:$0xff]
          %v411 = vld [vmem:[%s2 + $0x78] sm:$0xff]
          %v412 = vld [vmem:[%s2 + $0x80] sm:$0xff]
          %v413 = vld [vmem:[%s2 + $0x88] sm:$0xff]
          %v414 = vld [vmem:[%s2 + $0x90] sm:$0xff]
          %v415 = vld [vmem:[%s2 + $0x98] sm:$0xff]
          %v416 = vld [vmem:[%s2 + $0xa0] sm:$0xff]
          %v417 = vld [vmem:[%s2 + $0xa8] sm:$0xff]
          %v418 = vld [vmem:[%s2 + $0xb0] sm:$0xff]
          %v419 = vld [vmem:[%s2 + $0xb8] sm:$0xff]
          %v420 = vld [vmem:[%s2 + $0xc0] sm:$0xff]
          %v421 = vld [vmem:[%s2 + $0xc8] sm:$0xff]
          %v422 = vld [vmem:[%s2 + $0xd0] sm:$0xff]
          %v423 = vld [vmem:[%s2 + $0xd8] sm:$0xff]
          %v424 = vld [vmem:[%s2 + $0xe0] sm:$0xff]
          %v425 = vld [vmem:[%s2 + $0xe8] sm:$0xff]
          %v426 = vld [vmem:[%s2 + $0xf0] sm:$0xff]
          %v427 = vld [vmem:[%s2 + $0xf8] sm:$0xff]
          %v428 = vld [vmem:[%s3] sm:$0x3]
          %v430 = vperm.slane %v428, 0
          %v431 = vperm.slane %v428, 1
          %v466 = vunpack.c.l.b16 %v396
          %v467 = vunpack.c.h.b16 %v396
          %v468 = vunpack.c.l.b16 %v397
          %v469 = vunpack.c.h.b16 %v397
          %v470 = vunpack.c.l.b16 %v398
          %v471 = vunpack.c.h.b16 %v398
          %v472 = vunpack.c.l.b16 %v399
          %v473 = vunpack.c.h.b16 %v399
          %v474 = vunpack.c.l.b16 %v400
          %v475 = vunpack.c.h.b16 %v400
          %v476 = vunpack.c.l.b16 %v401
          %v477 = vunpack.c.h.b16 %v401
          %v478 = vunpack.c.l.b16 %v402
          %v479 = vunpack.c.h.b16 %v402
          %v480 = vunpack.c.l.b16 %v403
          %v481 = vunpack.c.h.b16 %v403
          %v482 = vunpack.c.l.b16 %v404
          %v483 = vunpack.c.h.b16 %v404
          %v484 = vunpack.c.l.b16 %v405
          %v485 = vunpack.c.h.b16 %v405
          %v486 = vunpack.c.l.b16 %v406
          %v487 = vunpack.c.h.b16 %v406
          %v488 = vunpack.c.l.b16 %v407
          %v489 = vunpack.c.h.b16 %v407
          %v490 = vunpack.c.l.b16 %v408
          %v491 = vunpack.c.h.b16 %v408
          %v492 = vunpack.c.l.b16 %v409
          %v493 = vunpack.c.h.b16 %v409
          %v494 = vunpack.c.l.b16 %v410
          %v495 = vunpack.c.h.b16 %v410
          %v496 = vunpack.c.l.b16 %v411
          %v497 = vunpack.c.h.b16 %v411
          %v498 = vunpack.c.l.b16 %v412
          %v499 = vunpack.c.h.b16 %v412
          %v500 = vunpack.c.l.b16 %v413
          %v501 = vunpack.c.h.b16 %v413
          %v502 = vunpack.c.l.b16 %v414
          %v503 = vunpack.c.h.b16 %v414
          %v504 = vunpack.c.l.b16 %v415
          %v505 = vunpack.c.h.b16 %v415
          %v506 = vunpack.c.l.b16 %v416
          %v507 = vunpack.c.h.b16 %v416
          %v508 = vunpack.c.l.b16 %v417
          %v509 = vunpack.c.h.b16 %v417
          %v510 = vunpack.c.l.b16 %v418
          %v511 = vunpack.c.h.b16 %v418
          %v512 = vunpack.c.l.b16 %v419
          %v513 = vunpack.c.h.b16 %v419
          %v514 = vunpack.c.l.b16 %v420
          %v515 = vunpack.c.h.b16 %v420
          %v516 = vunpack.c.l.b16 %v421
          %v517 = vunpack.c.h.b16 %v421
          %v518 = vunpack.c.l.b16 %v422
          %v519 = vunpack.c.h.b16 %v422
          %v520 = vunpack.c.l.b16 %v423
          %v521 = vunpack.c.h.b16 %v423
          %v522 = vunpack.c.l.b16 %v424
          %v523 = vunpack.c.h.b16 %v424
          %v524 = vunpack.c.l.b16 %v425
          %v525 = vunpack.c.h.b16 %v425
          %v526 = vunpack.c.l.b16 %v426
          %v527 = vunpack.c.h.b16 %v426
          %v528 = vunpack.c.l.b16 %v427
          %v529 = vunpack.c.h.b16 %v427
          %v530 = vpack.c.b16 %v468, %v466
          %v531 = vpack.c.b16 %v469, %v467
          %v532 = vpack.c.b16 %v472, %v470
          %v533 = vpack.c.b16 %v473, %v471
          %v534 = vpack.c.b16 %v476, %v474
          %v535 = vpack.c.b16 %v477, %v475
          %v536 = vpack.c.b16 %v480, %v478
          %v537 = vpack.c.b16 %v481, %v479
          %v538 = vpack.c.b16 %v484, %v482
          %v539 = vpack.c.b16 %v485, %v483
          %v540 = vpack.c.b16 %v488, %v486
          %v541 = vpack.c.b16 %v489, %v487
          %v542 = vpack.c.b16 %v492, %v490
          %v543 = vpack.c.b16 %v493, %v491
          %v544 = vpack.c.b16 %v496, %v494
          %v545 = vpack.c.b16 %v497, %v495
          %v546 = vpack.c.b16 %v500, %v498
          %v547 = vpack.c.b16 %v501, %v499
          %v548 = vpack.c.b16 %v504, %v502
          %v549 = vpack.c.b16 %v505, %v503
          %v550 = vpack.c.b16 %v508, %v506
          %v551 = vpack.c.b16 %v509, %v507
          %v552 = vpack.c.b16 %v512, %v510
          %v553 = vpack.c.b16 %v513, %v511
          %v554 = vpack.c.b16 %v516, %v514
          %v555 = vpack.c.b16 %v517, %v515
          %v556 = vpack.c.b16 %v520, %v518
          %v557 = vpack.c.b16 %v521, %v519
          %v558 = vpack.c.b16 %v524, %v522
          %v559 = vpack.c.b16 %v525, %v523
          %v560 = vpack.c.b16 %v528, %v526
          %v561 = vpack.c.b16 %v529, %v527
          %594 = vmatpush.bf16.msra.mxu0 %v544
          %595 = vmatpush.bf16.msra.mxu0 %v542
          %596 = vmatpush.bf16.msra.mxu0 %v540
          %597 = vmatpush.bf16.msra.mxu0 %v538
          %598 = vmatpush.bf16.msra.mxu0 %v536
          %599 = vmatpush.bf16.msra.mxu0 %v534
          %600 = vmatpush.bf16.msra.mxu0 %v532
          %601 = vmatpush.bf16.msra.mxu0 %v530
          %602 = vmatmul.bf16.gmra.mxu0 %v394
          %v603 = vpop.f32.mrf.mxu0
          %v604 = vadd.f32 %v430, %v603
          %v605 = vpop.f32.mrf.mxu0
          %606 = vdwg.mxu0
          %607 = vmatpush.bf16.msra.mxu0 %v560
          %608 = vmatpush.bf16.msra.mxu0 %v558
          %609 = vmatpush.bf16.msra.mxu0 %v556
          %610 = vmatpush.bf16.msra.mxu0 %v554
          %611 = vmatpush.bf16.msra.mxu0 %v552
          %612 = vmatpush.bf16.msra.mxu0 %v550
          %613 = vmatpush.bf16.msra.mxu0 %v548
          %614 = vmatpush.bf16.msra.mxu0 %v546
          %615 = vmatmul.bf16.gmra.mxu0 %v395
          %v616 = vpop.f32.mrf.mxu0
          %v617 = vadd.f32 %v604, %v616
          %v618 = vpop.f32.mrf.mxu0
          %619 = vdwg.mxu0
          %620 = vmatpush.bf16.msra.mxu0 %v545
          %621 = vmatpush.bf16.msra.mxu0 %v543
          %622 = vmatpush.bf16.msra.mxu0 %v541
          %623 = vmatpush.bf16.msra.mxu0 %v539
          %624 = vmatpush.bf16.msra.mxu0 %v537
          %625 = vmatpush.bf16.msra.mxu0 %v535
          %626 = vmatpush.bf16.msra.mxu0 %v533
          %627 = vmatpush.bf16.msra.mxu0 %v531
          %628 = vmatmul.bf16.gmra.mxu0 %v394
          %v629 = vpop.f32.mrf.mxu0
          %v630 = vadd.f32 %v431, %v629
          %v631 = vpop.f32.mrf.mxu0
          %632 = vdwg.mxu0
          %633 = vmatpush.bf16.msra.mxu0 %v561
          %634 = vmatpush.bf16.msra.mxu0 %v559
          %635 = vmatpush.bf16.msra.mxu0 %v557
          %636 = vmatpush.bf16.msra.mxu0 %v555
          %637 = vmatpush.bf16.msra.mxu0 %v553
          %638 = vmatpush.bf16.msra.mxu0 %v551
          %639 = vmatpush.bf16.msra.mxu0 %v549
          %640 = vmatpush.bf16.msra.mxu0 %v547
          %641 = vmatmul.bf16.gmra.mxu0 %v395
          %v642 = vpop.f32.mrf.mxu0
          %v643 = vadd.f32 %v630, %v642
          %v644 = vpop.f32.mrf.mxu0
          %645 = vdwg.mxu0
          %v648 = vrot.slane %v643, 6
          %v649 = vsel %vm378, %v617, %v648
          %651 = vst [vmem:[%s262] sm:$0xf] %v649
        $region85: #{image_encoder_forward.1} parent=72 // pred_fallthru
          _
        %p652 = scmp.lt.s32.totalorder %s19, 0
        %s653 = scalar_select %p652, %s19, 0
        %s654 = smul.addr %s653, 2
        %s655 = smul.addr %s654, 2
        %s656 = scalar_lea.vmem %s4, %s655
        // Predicated region
        $region86: #{image_encoder_forward.1} parent=72 // pred_check
          %p657 = pneg %p136
        $region87: #{image_encoder_forward.1} parent=72 // pred_check_branch
          %659 = sbr.rel (%p657) target = $region89
        $region88: #{image_encoder_forward.1} parent=72 // pred_region
          _
        $region89: #{image_encoder_forward.1} parent=72 // pred_fallthru
          _
        // Predicated region
        $region90: #{image_encoder_forward.1} parent=72 // pred_check
          %p660 = pneg %p136
        $region91: #{image_encoder_forward.1} parent=72 // pred_check_branch
          %662 = sbr.rel (%p660) target = $region93
        $region92: #{image_encoder_forward.1} parent=72 // pred_region
          %p663 = scmp.lt.s32.totalorder %s19, 0
          %s664 = scalar_select %p663, %s19, 0
          %s665 = smul.addr %s664, 2
          %s666 = smul.addr %s665, 2
          %s667 = scalar_lea.vmem %s4, %s666
        $region93: #{image_encoder_forward.1} parent=72 // pred_fallthru
          _
      $region73: #{image_encoder_forward.1} parent=5 // pred_fallthru
        _
      %p668 = scmp.le.s32.totalorder 2, %s10
      // Predicated region
      $region94: #{image_encoder_forward.1} parent=5 // pred_check
        %p669 = pneg %p668
      $region95: #{image_encoder_forward.1} parent=5 // pred_check_branch
        %671 = sbr.rel (%p669) target = $region97
      $region96: #{image_encoder_forward.1} parent=5 // pred_region
        %s672 = ssub.s32 %s10, 2
      $region97: #{image_encoder_forward.1} parent=5 // pred_fallthru
        _
    $region6: #{image_encoder_forward.1} parent=1 // loop_footer
      %s14 = sadd.s32 1, %s10
    $region7: #{image_encoder_forward.1} parent=1 // loop_footer_branch
      %9 = sbr.rel target = $region3
    $region8: #{image_encoder_forward.1} parent=1 // loop_exit
      _

</llo_original>
